<compile_context>
chip_gen: v7x
topology: tpu7x:2x2x1
jax: 0.10.0
libtpu: 0.0.40
codegen_flags: <defaults>
</compile_context>

<pallas_src>
import functools

import jax
import jax.numpy as jnp
import numpy as np
from jax.experimental import pallas as pl
from jax.experimental.pallas import tpu as pltpu


def _round_up(x, m):
    return ((x + m - 1) // m) * m


def _score_consistency_kernel(src_aug_ref, src_s_ref,
                              dst_aug_ref, dst_s_ref,
                              sum_ref, cnt_ref, *, radius_sq):
    i = pl.program_id(1)                      # src (reduction) axis, innermost

    @pl.when(i == 0)
    def _():
        sum_ref[...] = jnp.zeros_like(sum_ref)
        cnt_ref[...] = jnp.zeros_like(cnt_ref)

    # Full squared distance from one K=8 MXU matmul on augmented coordinates:
    #   [x, |x|^2, 1, 0..] @ [[-2 y^T], [1], [|y|^2], [0..]]
    #     = |x|^2 + |y|^2 - 2 <x, y>
    dist_sq = jnp.dot(src_aug_ref[...], dst_aug_ref[...],
                      preferred_element_type=jnp.float32)           # (tn, tm)

    mask_f = (dist_sq < radius_sq).astype(jnp.float32)              # reused twice
    diff = src_s_ref[...] - dst_s_ref[...]                          # (tn, tm)
    wd = mask_f * diff

    # Per-dst-column partials; the output block is resident across the src
    # axis (same block index for every i), so this is a VMEM accumulator.
    sum_ref[...] += jnp.sum(wd * diff, axis=0, keepdims=True)       # (1, tm)
    cnt_ref[...] += jnp.sum(mask_f, axis=0, keepdims=True)          # (1, tm)


def score_consistency_loss(src_xyz, src_scores, dst_xyz, dst_scores, radius,
                           *, tm=512, tn=256):
    """Pallas implementation of ScoreConsistencyLoss.forward."""
    N, C = src_xyz.shape
    M, _ = dst_xyz.shape

    # Tile sizes: lane axis (dst) multiple of 128, sublane axis (src) mult of 8.
    tm = min(tm, _round_up(M, 128))
    tn = min(tn, _round_up(N, 8))
    n_pad = _round_up(N, tn)
    m_pad = _round_up(M, tm)

    # Padded rows get far-away sentinel coordinates (opposite signs for src and
    # dst so padded-src vs padded-dst pairs are also far apart): they can never
    # fall inside the radius, so they corrupt neither sum nor count.
    sent_src, sent_dst = 1.0e6, -1.0e6

    src = jnp.pad(src_xyz.astype(jnp.float32), ((0, n_pad - N), (0, 0)),
                  constant_values=sent_src)                              # (n_pad, C)
    dst = jnp.pad(dst_xyz.astype(jnp.float32), ((0, m_pad - M), (0, 0)),
                  constant_values=sent_dst)                              # (m_pad, C)

    # Grid-invariant row norms, computed once here instead of every grid step,
    # and folded into the matmul operands (augmented-coordinate trick).
    src_sq = jnp.sum(src * src, axis=1, keepdims=True)                   # (n_pad, 1)
    dst_sq = jnp.sum(dst * dst, axis=1, keepdims=True)                   # (m_pad, 1)

    k_full = _round_up(C + 2, 8)
    k_zero = k_full - (C + 2)
    src_aug = jnp.concatenate(
        [src, src_sq, jnp.ones((n_pad, 1), jnp.float32),
         jnp.zeros((n_pad, k_zero), jnp.float32)], axis=1)               # (n_pad, K)
    dst_aug = jnp.concatenate(
        [-2.0 * dst, jnp.ones((m_pad, 1), jnp.float32), dst_sq,
         jnp.zeros((m_pad, k_zero), jnp.float32)], axis=1).T             # (K, m_pad)

    src_s = jnp.pad(src_scores.reshape(-1).astype(jnp.float32),
                    (0, n_pad - N)).reshape(n_pad, 1)
    dst_s = jnp.pad(dst_scores.reshape(-1).astype(jnp.float32),
                    (0, m_pad - M)).reshape(1, m_pad)

    kernel = functools.partial(_score_consistency_kernel,
                               radius_sq=float(radius) * float(radius))

    sums, counts = pl.pallas_call(
        kernel,
        out_shape=(jax.ShapeDtypeStruct((1, m_pad), jnp.float32),
                   jax.ShapeDtypeStruct((1, m_pad), jnp.float32)),
        grid_spec=pltpu.PrefetchScalarGridSpec(
            num_scalar_prefetch=0,
            grid=(m_pad // tm, n_pad // tn),        # (dst tiles, src tiles)
            in_specs=[
                pl.BlockSpec((tn, k_full), lambda j, i: (i, 0)),  # augmented src
                pl.BlockSpec((tn, 1), lambda j, i: (i, 0)),       # src scores
                pl.BlockSpec((k_full, tm), lambda j, i: (0, j)),  # augmented dst^T
                pl.BlockSpec((1, tm), lambda j, i: (0, j)),       # dst scores
            ],
            out_specs=[
                pl.BlockSpec((1, tm), lambda j, i: (0, j)),       # per-col sums
                pl.BlockSpec((1, tm), lambda j, i: (0, j)),       # per-col counts
            ],
        ),
        compiler_params=pltpu.CompilerParams(
            dimension_semantics=("parallel", "arbitrary"),
            vmem_limit_bytes=32 * 1024 * 1024,     # explicit budget, v5e..v7x safe
        ),
    )(src_aug, src_s, dst_aug, dst_s)

    total = jnp.sum(sums)
    # Per-column counts are exact small integers in f32; sum them as int32 so
    # very large point clouds don't silently lose matches to f32 rounding.
    count = jnp.sum(counts.astype(jnp.int32))
    # Mean over matched pairs (NaN if no matches, same as torch .mean() on empty).
    return total / count.astype(jnp.float32)


def _reference(src_xyz, src_scores, dst_xyz, dst_scores, radius):
    d2 = jnp.sum((src_xyz[:, None, :] - dst_xyz[None, :, :]) ** 2, axis=-1)
    mask = d2 < radius * radius
    diff2 = (src_scores[:, None] - dst_scores[None, :]) ** 2
    return jnp.sum(jnp.where(mask, diff2, 0.0)) / jnp.sum(mask)


if __name__ == "__main__":
    config = {"loss": {"vote_desc_positive_radius": 0.25}}
    radius = config["loss"]["vote_desc_positive_radius"]

    key = jax.random.PRNGKey(0)
    k1, k2, k3, k4 = jax.random.split(key, 4)
    N, M = 384, 1280          # multi-tile in both grid axes at tn=128 / tm=512
    src_xyz = jax.random.uniform(k1, (N, 3), dtype=jnp.float32)
    dst_xyz = jax.random.uniform(k2, (M, 3), dtype=jnp.float32)
    src_scores = jax.random.uniform(k3, (N,), dtype=jnp.float32)
    dst_scores = jax.random.uniform(k4, (M,), dtype=jnp.float32)

    loss = score_consistency_loss(src_xyz, src_scores, dst_xyz, dst_scores,
                                  radius, tm=512, tn=128)
    loss = jax.block_until_ready(loss)

    ref = _reference(src_xyz, src_scores, dst_xyz, dst_scores, radius)
    # rtol looser than machine eps: the kernel uses the |x|^2+|y|^2-2x.y
    # expansion, so a pair sitting essentially on the radius boundary can flip
    # in/out of the mask relative to the direct (x-y)^2 reference.
    np.testing.assert_allclose(np.asarray(loss), np.asarray(ref),
                               rtol=5e-4, atol=1e-6)
    print("KERNEL_OK")
</pallas_src>

<mosaic_0001>
module attributes {stable_mosaic.version = 11 : i64} {
  func.func @_score_consistency_kernel(%arg0: i32, %arg1: i32, %arg2: memref<128x8xf32, #tpu.memory_space<vmem>>, %arg3: memref<128x1xf32, #tpu.memory_space<vmem>>, %arg4: memref<8x512xf32, #tpu.memory_space<vmem>>, %arg5: memref<1x512xf32, #tpu.memory_space<vmem>>, %arg6: memref<1x512xf32, #tpu.memory_space<vmem>>, %arg7: memref<1x512xf32, #tpu.memory_space<vmem>>) attributes {dimension_semantics = [#tpu.dimension_semantics<parallel>, #tpu.dimension_semantics<arbitrary>], iteration_bounds = array<i64: 3, 3>, scalar_prefetch = 0 : i64, scratch_operands = 0 : i64, tpu.core_type = #tpu.core_type<tc>, window_params = [{transform_indices = @transform_0, window_bounds = array<i64: 128, 8>}, {transform_indices = @transform_1, window_bounds = array<i64: 128, 1>}, {transform_indices = @transform_2, window_bounds = array<i64: 8, 512>}, {transform_indices = @transform_3, window_bounds = array<i64: 1, 512>}, {transform_indices = @transform_4, window_bounds = array<i64: 1, 512>}, {transform_indices = @transform_5, window_bounds = array<i64: 1, 512>}]} {
    %c0_i32 = arith.constant 0 : i32
    %0 = arith.cmpi eq, %arg1, %c0_i32 : i32
    %1 = arith.extui %0 : i1 to i32
    %c0_i32_0 = arith.constant 0 : i32
    %2 = arith.cmpi ne, %1, %c0_i32_0 : i32
    scf.if %2 {
      %cst_19 = arith.constant 0.000000e+00 : f32
      %27 = vector.broadcast %cst_19 : f32 to vector<1x512xf32>
      %c0_20 = arith.constant 0 : index
      %c0_21 = arith.constant 0 : index
      %28 = vector.load %arg6[%c0_20, %c0_21] : memref<1x512xf32, #tpu.memory_space<vmem>>, vector<1x512xf32>
      tpu.vector_store %arg6[%c0_20, %c0_21], %27 {strides = array<i32>} : memref<1x512xf32, #tpu.memory_space<vmem>>, vector<1x512xf32>,
      %cst_22 = arith.constant 0.000000e+00 : f32
      %29 = vector.broadcast %cst_22 : f32 to vector<1x512xf32>
      %c0_23 = arith.constant 0 : index
      %c0_24 = arith.constant 0 : index
      %30 = vector.load %arg7[%c0_23, %c0_24] : memref<1x512xf32, #tpu.memory_space<vmem>>, vector<1x512xf32>
      tpu.vector_store %arg7[%c0_23, %c0_24], %29 {strides = array<i32>} : memref<1x512xf32, #tpu.memory_space<vmem>>, vector<1x512xf32>,
    } else {
    }
    %c0 = arith.constant 0 : index
    %c0_1 = arith.constant 0 : index
    %3 = vector.load %arg2[%c0, %c0_1] : memref<128x8xf32, #tpu.memory_space<vmem>>, vector<128x8xf32>
    %c0_2 = arith.constant 0 : index
    %c0_3 = arith.constant 0 : index
    %4 = vector.load %arg4[%c0_2, %c0_3] : memref<8x512xf32, #tpu.memory_space<vmem>>, vector<8x512xf32>
    %cst = arith.constant dense<0.000000e+00> : vector<128x512xf32>
    %5 = tpu.matmul %3, %4, %cst {dimension_numbers = #tpu.dot_dimension_numbers<[1], [0], [0], [1], [0, 0, 1, 1], [], []>} : vector<128x8xf32>, vector<8x512xf32>, vector<128x512xf32> -> vector<128x512xf32>
    %cst_4 = arith.constant 6.250000e-02 : f32
    %6 = vector.broadcast %cst_4 : f32 to vector<128x512xf32>
    %7 = arith.cmpf olt, %5, %6 : vector<128x512xf32>
    %8 = arith.extui %7 : vector<128x512xi1> to vector<128x512xi32>
    %9 = arith.sitofp %8 : vector<128x512xi32> to vector<128x512xf32>
    %c0_5 = arith.constant 0 : index
    %c0_6 = arith.constant 0 : index
    %10 = vector.load %arg3[%c0_5, %c0_6] : memref<128x1xf32, #tpu.memory_space<vmem>>, vector<128x1xf32>
    %c0_7 = arith.constant 0 : index
    %c0_8 = arith.constant 0 : index
    %11 = vector.load %arg5[%c0_7, %c0_8] : memref<1x512xf32, #tpu.memory_space<vmem>>, vector<1x512xf32>
    %12 = vector.broadcast %10 : vector<128x1xf32> to vector<128x512xf32>
    %13 = vector.broadcast %11 : vector<1x512xf32> to vector<128x512xf32>
    %14 = arith.subf %12, %13 : vector<128x512xf32>
    %15 = arith.mulf %9, %14 : vector<128x512xf32>
    %c0_9 = arith.constant 0 : index
    %c0_10 = arith.constant 0 : index
    %16 = vector.load %arg6[%c0_9, %c0_10] : memref<1x512xf32, #tpu.memory_space<vmem>>, vector<1x512xf32>
    %17 = arith.mulf %15, %14 : vector<128x512xf32>
    %cst_11 = arith.constant dense<0.000000e+00> : vector<512xf32>
    %18 = vector.multi_reduction <add>, %17, %cst_11 [0] : vector<128x512xf32> to vector<512xf32>
    %19 = vector.shape_cast %18 : vector<512xf32> to vector<1x512xf32>
    %20 = arith.addf %16, %19 : vector<1x512xf32>
    %c0_12 = arith.constant 0 : index
    %c0_13 = arith.constant 0 : index
    %21 = vector.load %arg6[%c0_12, %c0_13] : memref<1x512xf32, #tpu.memory_space<vmem>>, vector<1x512xf32>
    tpu.vector_store %arg6[%c0_12, %c0_13], %20 {strides = array<i32>} : memref<1x512xf32, #tpu.memory_space<vmem>>, vector<1x512xf32>,
    %c0_14 = arith.constant 0 : index
    %c0_15 = arith.constant 0 : index
    %22 = vector.load %arg7[%c0_14, %c0_15] : memref<1x512xf32, #tpu.memory_space<vmem>>, vector<1x512xf32>
    %cst_16 = arith.constant dense<0.000000e+00> : vector<512xf32>
    %23 = vector.multi_reduction <add>, %9, %cst_16 [0] : vector<128x512xf32> to vector<512xf32>
    %24 = vector.shape_cast %23 : vector<512xf32> to vector<1x512xf32>
    %25 = arith.addf %22, %24 : vector<1x512xf32>
    %c0_17 = arith.constant 0 : index
    %c0_18 = arith.constant 0 : index
    %26 = vector.load %arg7[%c0_17, %c0_18] : memref<1x512xf32, #tpu.memory_space<vmem>>, vector<1x512xf32>
    tpu.vector_store %arg7[%c0_17, %c0_18], %25 {strides = array<i32>} : memref<1x512xf32, #tpu.memory_space<vmem>>, vector<1x512xf32>,
    return
  }
  func.func @transform_0(%arg0: i32, %arg1: i32) -> (i32, i32) {
    %c0_i32 = arith.constant 0 : i32
    %c0_i32_0 = arith.constant 0 : i32
    return %arg1, %c0_i32 : i32, i32
  }
  func.func @transform_1(%arg0: i32, %arg1: i32) -> (i32, i32) {
    %c0_i32 = arith.constant 0 : i32
    %c0_i32_0 = arith.constant 0 : i32
    return %arg1, %c0_i32 : i32, i32
  }
  func.func @transform_2(%arg0: i32, %arg1: i32) -> (i32, i32) {
    %c0_i32 = arith.constant 0 : i32
    %c0_i32_0 = arith.constant 0 : i32
    return %c0_i32, %arg0 : i32, i32
  }
  func.func @transform_3(%arg0: i32, %arg1: i32) -> (i32, i32) {
    %c0_i32 = arith.constant 0 : i32
    %c0_i32_0 = arith.constant 0 : i32
    return %c0_i32, %arg0 : i32, i32
  }
  func.func @transform_4(%arg0: i32, %arg1: i32) -> (i32, i32) {
    %c0_i32 = arith.constant 0 : i32
    %c0_i32_0 = arith.constant 0 : i32
    return %c0_i32, %arg0 : i32, i32
  }
  func.func @transform_5(%arg0: i32, %arg1: i32) -> (i32, i32) {
    %c0_i32 = arith.constant 0 : i32
    %c0_i32_0 = arith.constant 0 : i32
    return %c0_i32, %arg0 : i32, i32
  }
}

</mosaic_0001>

<llo_original>
// kernel: tpu_custom_call.1
$region0: #{tpu_custom_call.1}
  #allocation0 [shape = 'u32[]', space=smem, size = 0x4, offset = 0x4, fixed_abs, tag = 'smem constant byte address 0x4 - core index']
  #allocation1 [shape = 'u32[144,128]{1,0:T(1,128)}', space=vmem, size = 0x12000, scoped, tag = 'internal scratch']
  %s0 = inlined_call_operand.vmem [shape: f32[384,8], index: 0, kind: input, shape index: {}]
  %s1 = inlined_call_operand.vmem [shape: f32[384,1], index: 1, kind: input, shape index: {}]
  %s2 = inlined_call_operand.vmem [shape: f32[8,1536], index: 2, kind: input, shape index: {}]
  %s3 = inlined_call_operand.vmem [shape: f32[1,1536], index: 3, kind: input, shape index: {}]
  %s4 = inlined_call_operand.hbm [shape: f32[1,1536], index: 4, kind: output, shape index: {0}]
  %s5 = inlined_call_operand.hbm [shape: f32[1,1536], index: 5, kind: output, shape index: {1}]
  %6 = xla_tuple %s4, %s5
  %s7 = sld [smem:[#allocation0]]
  $region61: #{tpu_custom_call.1} parent=0
    _
  %s9 = ssub.s32 1, %s7
  %s10 = scalar_select 0, %s9, %s7
  $region1: #{tpu_custom_call.1} parent=0
    #allocation2 [shape = 'u8[4096]{0}', space=vmem, size = 0x1000, scoped, tag = 'output window, operand 0']
    #allocation3 [shape = 's32[2]{0}', space=sflag, size = 0x8, scoped, tag = 'scoped memory for tpu_custom_call.1']
    #allocation4 [shape = 'u8[4096]{0}', space=vmem, size = 0x1000, scoped, tag = 'output window, operand 1']
    #allocation5 [shape = 's32[2]{0}', space=sflag, size = 0x8, scoped, tag = 'scoped memory for tpu_custom_call.1']
    %11 = vsyncpa [#allocation3], 0
    %s12 = scalar_lea.sflag [#allocation3], 1
    %13 = vsyncpa %s12, 0
    %14 = vsyncpa [#allocation5], 0
    %s15 = scalar_lea.sflag [#allocation5], 1
    %16 = vsyncpa %s15, 0
    loop: start=0, step=1, limit=11
    $region2: #{tpu_custom_call.1} parent=1 // loop_pre_header
      _
    $region3: #{tpu_custom_call.1} parent=1 // loop_header
      %s18 = sphi 0, %s22
      %p19 = scmp.ge.s32.totalorder %s18, 11
      %s25 = sphi 0, %s37
      %s26 = sphi 0, %s33
      %s27 = sphi 0, %s25
      %s28 = sphi 0, %s26
      %s29 = sphi 0, %s27
      %s30 = sphi 0, %s28
      %s40 = sphi 0, %s42
      %s43 = sphi 0, %s40
      %s44 = sphi 0, %s43
      %s60 = sphi 0, %s44
      %s66 = sphi 0, %s68
      %s69 = sphi 0, %s66
      %s70 = sphi 0, %s69
      %s86 = sphi 0, %s70
      %s92 = sphi 0, %s94
      %s95 = sphi 0, %s92
      %s96 = sphi 0, %s95
      %s112 = sphi 0, %s96
      %s118 = sphi 0, %s120
      %s121 = sphi 0, %s118
      %s122 = sphi 0, %s121
      %s138 = sphi 0, %s122
      %s144 = sphi 0, %s146
      %s147 = sphi 0, %s144
      %s148 = sphi 0, %s147
      %s164 = sphi 0, %s148
      %s170 = sphi 0, %s172
      %s173 = sphi 0, %s170
      %s174 = sphi 0, %s173
      %s190 = sphi 0, %s174
    $region4: #{tpu_custom_call.1} parent=1 // loop_header_branch
      %21 = sbr.rel (%p19) target = $region8
    $region5: #{tpu_custom_call.1} parent=1 // loop_body
      %s23 = ssub.s32 %s18, 1
      %s24 = ssub.s32 %s18, 2
      %s31 = sadd.s32 1, %s26
      %p32 = scmp.ge.s32.totalorder %s31, 3
      %s33 = scalar_select %p32, 0, %s31
      %s34 = sadd.s32 1, %s25
      %s35 = scalar_select %p32, %s34, %s25
      %p36 = scmp.ge.s32.totalorder %s35, 3
      %s37 = scalar_select %p36, 0, %s35
      %s38 = ssub.s32 %s26, %s33
      %p39 = scmp.eq.s32.totalorder %s38, 0
      %s41 = sadd.s32 %s40, 1
      %s42 = scalar_select %p39, %s40, %s41
      %p45 = pneg %p39
      %p46 = scmp.eq.s32.totalorder %s18, 8
      %p47 = por %p45, %p46
      %p48 = scmp.ne.s32.totalorder %s40, %s43
      %p49 = scmp.eq.s32.totalorder %s18, 0
      %p50 = por %p48, %p49
      %p51 = scmp.ne.s32.totalorder %s40, %s43
      %p52 = scmp.eq.s32.totalorder %s23, 8
      %p53 = por %p51, %p52
      %p54 = scmp.ne.s32.totalorder %s43, %s44
      %p55 = scmp.eq.s32.totalorder %s23, 0
      %p56 = por %p54, %p55
      %p57 = scmp.ne.s32.totalorder %s43, %s44
      %p58 = scmp.eq.s32.totalorder %s24, 8
      %p59 = por %p57, %p58
      %p61 = scmp.ne.s32.totalorder %s44, %s60
      %p62 = scmp.eq.s32.totalorder %s24, 0
      %p63 = por %p61, %p62
      %s64 = ssub.s32 %s26, %s33
      %p65 = scmp.eq.s32.totalorder %s64, 0
      %s67 = sadd.s32 %s66, 1
      %s68 = scalar_select %p65, %s66, %s67
      %p71 = pneg %p65
      %p72 = scmp.eq.s32.totalorder %s18, 8
      %p73 = por %p71, %p72
      %p74 = scmp.ne.s32.totalorder %s66, %s69
      %p75 = scmp.eq.s32.totalorder %s18, 0
      %p76 = por %p74, %p75
      %p77 = scmp.ne.s32.totalorder %s66, %s69
      %p78 = scmp.eq.s32.totalorder %s23, 8
      %p79 = por %p77, %p78
      %p80 = scmp.ne.s32.totalorder %s69, %s70
      %p81 = scmp.eq.s32.totalorder %s23, 0
      %p82 = por %p80, %p81
      %p83 = scmp.ne.s32.totalorder %s69, %s70
      %p84 = scmp.eq.s32.totalorder %s24, 8
      %p85 = por %p83, %p84
      %p87 = scmp.ne.s32.totalorder %s70, %s86
      %p88 = scmp.eq.s32.totalorder %s24, 0
      %p89 = por %p87, %p88
      %s90 = ssub.s32 %s25, %s37
      %p91 = scmp.eq.s32.totalorder %s90, 0
      %s93 = sadd.s32 %s92, 1
      %s94 = scalar_select %p91, %s92, %s93
      %p97 = pneg %p91
      %p98 = scmp.eq.s32.totalorder %s18, 8
      %p99 = por %p97, %p98
      %p100 = scmp.ne.s32.totalorder %s92, %s95
      %p101 = scmp.eq.s32.totalorder %s18, 0
      %p102 = por %p100, %p101
      %p103 = scmp.ne.s32.totalorder %s92, %s95
      %p104 = scmp.eq.s32.totalorder %s23, 8
      %p105 = por %p103, %p104
      %p106 = scmp.ne.s32.totalorder %s95, %s96
      %p107 = scmp.eq.s32.totalorder %s23, 0
      %p108 = por %p106, %p107
      %p109 = scmp.ne.s32.totalorder %s95, %s96
      %p110 = scmp.eq.s32.totalorder %s24, 8
      %p111 = por %p109, %p110
      %p113 = scmp.ne.s32.totalorder %s96, %s112
      %p114 = scmp.eq.s32.totalorder %s24, 0
      %p115 = por %p113, %p114
      %s116 = ssub.s32 %s25, %s37
      %p117 = scmp.eq.s32.totalorder %s116, 0
      %s119 = sadd.s32 %s118, 1
      %s120 = scalar_select %p117, %s118, %s119
      %p123 = pneg %p117
      %p124 = scmp.eq.s32.totalorder %s18, 8
      %p125 = por %p123, %p124
      %p126 = scmp.ne.s32.totalorder %s118, %s121
      %p127 = scmp.eq.s32.totalorder %s18, 0
      %p128 = por %p126, %p127
      %p129 = scmp.ne.s32.totalorder %s118, %s121
      %p130 = scmp.eq.s32.totalorder %s23, 8
      %p131 = por %p129, %p130
      %p132 = scmp.ne.s32.totalorder %s121, %s122
      %p133 = scmp.eq.s32.totalorder %s23, 0
      %p134 = por %p132, %p133
      %p135 = scmp.ne.s32.totalorder %s121, %s122
      %p136 = scmp.eq.s32.totalorder %s24, 8
      %p137 = por %p135, %p136
      %p139 = scmp.ne.s32.totalorder %s122, %s138
      %p140 = scmp.eq.s32.totalorder %s24, 0
      %p141 = por %p139, %p140
      %s142 = ssub.s32 %s25, %s37
      %p143 = scmp.eq.s32.totalorder %s142, 0
      %s145 = sadd.s32 %s144, 1
      %s146 = scalar_select %p143, %s144, %s145
      %p149 = pneg %p143
      %p150 = scmp.eq.s32.totalorder %s18, 8
      %p151 = por %p149, %p150
      %p152 = scmp.ne.s32.totalorder %s144, %s147
      %p153 = scmp.eq.s32.totalorder %s18, 0
      %p154 = por %p152, %p153
      %p155 = scmp.ne.s32.totalorder %s144, %s147
      %p156 = scmp.eq.s32.totalorder %s23, 8
      %p157 = por %p155, %p156
      %p158 = scmp.ne.s32.totalorder %s147, %s148
      %p159 = scmp.eq.s32.totalorder %s23, 0
      %p160 = por %p158, %p159
      %p161 = scmp.ne.s32.totalorder %s147, %s148
      %p162 = scmp.eq.s32.totalorder %s24, 8
      %p163 = por %p161, %p162
      %p165 = scmp.ne.s32.totalorder %s148, %s164
      %p166 = scmp.eq.s32.totalorder %s24, 0
      %p167 = por %p165, %p166
      %s168 = ssub.s32 %s25, %s37
      %p169 = scmp.eq.s32.totalorder %s168, 0
      %s171 = sadd.s32 %s170, 1
      %s172 = scalar_select %p169, %s170, %s171
      %p175 = pneg %p169
      %p176 = scmp.eq.s32.totalorder %s18, 8
      %p177 = por %p175, %p176
      %p178 = scmp.ne.s32.totalorder %s170, %s173
      %p179 = scmp.eq.s32.totalorder %s18, 0
      %p180 = por %p178, %p179
      %p181 = scmp.ne.s32.totalorder %s170, %s173
      %p182 = scmp.eq.s32.totalorder %s23, 8
      %p183 = por %p181, %p182
      %p184 = scmp.ne.s32.totalorder %s173, %s174
      %p185 = scmp.eq.s32.totalorder %s23, 0
      %p186 = por %p184, %p185
      %p187 = scmp.ne.s32.totalorder %s173, %s174
      %p188 = scmp.eq.s32.totalorder %s24, 8
      %p189 = por %p187, %p188
      %p191 = scmp.ne.s32.totalorder %s174, %s190
      %p192 = scmp.eq.s32.totalorder %s24, 0
      %p193 = por %p191, %p192
      %p194 = scmp.le.s32.totalorder 1, %s18
      %p195 = scmp.lt.s32.totalorder %s18, 10
      %p196 = pnand %p194, %p195
      %p197 = pneg %p196
      // Predicated region
      $region9: #{tpu_custom_call.1} parent=5 // pred_check
        _
      $region10: #{tpu_custom_call.1} parent=5 // pred_check_branch
        %199 = sbr.rel (%p196) target = $region12
      $region11: #{tpu_custom_call.1} parent=5 // pred_region
        %s200 = ssub.s32 %s18, 1
      $region12: #{tpu_custom_call.1} parent=5 // pred_fallthru
        _
      %p201 = scmp.lt.s32.totalorder %s18, 9
      // Predicated region
      $region13: #{tpu_custom_call.1} parent=5 // pred_check
        %p202 = pneg %p201
      $region14: #{tpu_custom_call.1} parent=5 // pred_check_branch
        %204 = sbr.rel (%p202) target = $region16
      $region15: #{tpu_custom_call.1} parent=5 // pred_region
        // Predicated region
        $region17: #{tpu_custom_call.1} parent=15 // pred_check
          %p205 = pneg %p50
        $region18: #{tpu_custom_call.1} parent=15 // pred_check_branch
          %207 = sbr.rel (%p205) target = $region20
        $region19: #{tpu_custom_call.1} parent=15 // pred_region
          %s208 = smul.u32 16, %s26
          %p209 = scmp.lt.s32.totalorder %s208, 47
          %s210 = scalar_select %p209, %s208, 47
          %s211 = smul.addr %s210, 8
          %s212 = scalar_lea.vmem %s0, %s211
          %s213 = smul.u32 16, %s26
        $region20: #{tpu_custom_call.1} parent=15 // pred_fallthru
          _
        // Predicated region
        $region21: #{tpu_custom_call.1} parent=15 // pred_check
          %p214 = pneg %p76
        $region22: #{tpu_custom_call.1} parent=15 // pred_check_branch
          %216 = sbr.rel (%p214) target = $region24
        $region23: #{tpu_custom_call.1} parent=15 // pred_region
          %s217 = smul.u32 16, %s26
          %p218 = scmp.lt.s32.totalorder %s217, 47
          %s219 = scalar_select %p218, %s217, 47
          %s220 = smul.addr %s219, 8
          %s221 = scalar_lea.vmem %s1, %s220
          %s222 = smul.u32 16, %s26
        $region24: #{tpu_custom_call.1} parent=15 // pred_fallthru
          _
        // Predicated region
        $region25: #{tpu_custom_call.1} parent=15 // pred_check
          %p223 = pneg %p102
        $region26: #{tpu_custom_call.1} parent=15 // pred_check_branch
          %225 = sbr.rel (%p223) target = $region28
        $region27: #{tpu_custom_call.1} parent=15 // pred_region
          %s226 = smul.u32 4, %s25
          %p227 = scmp.lt.s32.totalorder %s226, 11
          %s228 = scalar_select %p227, %s226, 11
          %s229 = smul.addr %s228, 8
          %s230 = scalar_lea.vmem %s2, %s229
          %s231 = smul.u32 4, %s25
        $region28: #{tpu_custom_call.1} parent=15 // pred_fallthru
          _
        // Predicated region
        $region29: #{tpu_custom_call.1} parent=15 // pred_check
          %p232 = pneg %p128
        $region30: #{tpu_custom_call.1} parent=15 // pred_check_branch
          %234 = sbr.rel (%p232) target = $region32
        $region31: #{tpu_custom_call.1} parent=15 // pred_region
          %s235 = smul.u32 4, %s25
          %p236 = scmp.lt.s32.totalorder %s235, 11
          %s237 = scalar_select %p236, %s235, 11
          %s238 = scalar_lea.vmem %s3, %s237
          %s239 = smul.u32 4, %s25
        $region32: #{tpu_custom_call.1} parent=15 // pred_fallthru
          _
      $region16: #{tpu_custom_call.1} parent=5 // pred_fallthru
        _
      %p240 = scmp.le.s32.totalorder 1, %s18
      %p241 = scmp.lt.s32.totalorder %s18, 10
      %p242 = pnand %p240, %p241
      %p243 = pneg %p242
      // Predicated region
      $region33: #{tpu_custom_call.1} parent=5 // pred_check
        _
      $region34: #{tpu_custom_call.1} parent=5 // pred_check_branch
        %245 = sbr.rel (%p242) target = $region36
      $region35: #{tpu_custom_call.1} parent=5 // pred_region
        %s246 = ssub.s32 %s18, 1
        %s247 = smul.u32 16, %s28
        %p248 = scmp.lt.s32.totalorder %s247, 47
        %s249 = scalar_select %p248, %s247, 47
        %s250 = smul.addr %s249, 8
        %s251 = scalar_lea.vmem %s0, %s250
        %p252 = pneg %p56
        %p253 = pneg %p53
        %s254 = smul.u32 16, %s28
        %p255 = scmp.lt.s32.totalorder %s254, 47
        %s256 = scalar_select %p255, %s254, 47
        %s257 = smul.addr %s256, 8
        %s258 = scalar_lea.vmem %s1, %s257
        %p259 = pneg %p82
        %p260 = pneg %p79
        %s261 = smul.u32 4, %s27
        %p262 = scmp.lt.s32.totalorder %s261, 11
        %s263 = scalar_select %p262, %s261, 11
        %s264 = smul.addr %s263, 8
        %s265 = scalar_lea.vmem %s2, %s264
        %p266 = pneg %p108
        %p267 = pneg %p105
        %s268 = smul.u32 4, %s27
        %p269 = scmp.lt.s32.totalorder %s268, 11
        %s270 = scalar_select %p269, %s268, 11
        %s271 = scalar_lea.vmem %s3, %s270
        %p272 = pneg %p134
        %p273 = pneg %p131
        %p274 = pneg %p160
        %p275 = pneg %p157
        %s276 = sand.u32 %s147, 1
        %s277 = scalar_lea.sflag [#allocation3], %s276
        %s278 = sand.u32 %s147, 1
        %s279 = smul.addr %s278, 4
        %s280 = scalar_lea.vmem [#allocation2], %s279
        %p281 = pneg %p186
        %p282 = pneg %p183
        %s283 = sand.u32 %s173, 1
        %s284 = scalar_lea.sflag [#allocation5], %s283
        %s285 = sand.u32 %s173, 1
        %s286 = smul.addr %s285, 4
        %s287 = scalar_lea.vmem [#allocation4], %s286
        %s288 = smul.u32 16, %s28
        %p289 = scmp.lt.s32.totalorder %s288, 47
        %s290 = scalar_select %p289, %s288, 47
        %s291 = smul.addr %s290, 8
        %s292 = scalar_lea.vmem %s0, %s291
        %s293 = smul.u32 16, %s28
        %s294 = smul.u32 16, %s28
        %p295 = scmp.lt.s32.totalorder %s294, 47
        %s296 = scalar_select %p295, %s294, 47
        %s297 = smul.addr %s296, 8
        %s298 = scalar_lea.vmem %s1, %s297
        %s299 = smul.u32 16, %s28
        %s300 = smul.u32 4, %s27
        %p301 = scmp.lt.s32.totalorder %s300, 11
        %s302 = scalar_select %p301, %s300, 11
        %s303 = smul.addr %s302, 8
        %s304 = scalar_lea.vmem %s2, %s303
        %s305 = smul.u32 4, %s27
        %s306 = smul.u32 4, %s27
        %p307 = scmp.lt.s32.totalorder %s306, 11
        %s308 = scalar_select %p307, %s306, 11
        %s309 = scalar_lea.vmem %s3, %s308
        %s310 = smul.u32 4, %s27
        %s311 = smul.u32 4, %s27
        %s312 = smul.u32 4, %s27
        %p313 = scmp.eq.s32.totalorder %s28, 0
        // Predicated region
        $region37: #{tpu_custom_call.1} parent=35 // pred_check
          %p314 = pneg %p313
        $region38: #{tpu_custom_call.1} parent=35 // pred_check_branch
          %316 = sbr.rel (%p314) target = $region40
        $region39: #{tpu_custom_call.1} parent=35 // pred_region
          %v317 = vlaneseq
          %vm318 = vcmp.ge.s32.totalorder %v317, 0
          %vm319 = vcmp.lt.s32.totalorder %v317, 512
          %vm320 = vmand %vm318, %vm319
          %321 = vst.msk [vmem:[%s280] sm:$0xf] %vm320, 0.0
          %322 = vst.msk [vmem:[%s287] sm:$0xf] %vm320, 0.0
        $region40: #{tpu_custom_call.1} parent=35 // pred_fallthru
          _
        %v323 = vld [vmem:[%s292] sm:$0xff]
        %v324 = vld [vmem:[%s292 + $0x8] sm:$0xff]
        %v325 = vld [vmem:[%s292 + $0x10] sm:$0xff]
        %v326 = vld [vmem:[%s292 + $0x18] sm:$0xff]
        %v327 = vld [vmem:[%s292 + $0x20] sm:$0xff]
        %v328 = vld [vmem:[%s292 + $0x28] sm:$0xff]
        %v329 = vld [vmem:[%s292 + $0x30] sm:$0xff]
        %v330 = vld [vmem:[%s292 + $0x38] sm:$0xff]
        %v331 = vld [vmem:[%s292 + $0x40] sm:$0xff]
        %v332 = vld [vmem:[%s292 + $0x48] sm:$0xff]
        %v333 = vld [vmem:[%s292 + $0x50] sm:$0xff]
        %v334 = vld [vmem:[%s292 + $0x58] sm:$0xff]
        %v335 = vld [vmem:[%s292 + $0x60] sm:$0xff]
        %v336 = vld [vmem:[%s292 + $0x68] sm:$0xff]
        %v337 = vld [vmem:[%s292 + $0x70] sm:$0xff]
        %v338 = vld [vmem:[%s292 + $0x78] sm:$0xff]
        %v339 = vld [vmem:[%s304] sm:$0xff]
        %v340 = vld [vmem:[%s304 + $0x8] sm:$0xff]
        %v341 = vld [vmem:[%s304 + $0x10] sm:$0xff]
        %v342 = vld [vmem:[%s304 + $0x18] sm:$0xff]
        %vm343 = vcmask 64512
        %v345 = vsel %vm343, %v323, 0
        %v348 = vsel %vm343, %v324, 0
        %v351 = vsel %vm343, %v325, 0
        %v354 = vsel %vm343, %v326, 0
        %v357 = vsel %vm343, %v327, 0
        %v360 = vsel %vm343, %v328, 0
        %v363 = vsel %vm343, %v329, 0
        %v366 = vsel %vm343, %v330, 0
        %v369 = vsel %vm343, %v331, 0
        %v372 = vsel %vm343, %v332, 0
        %v375 = vsel %vm343, %v333, 0
        %v378 = vsel %vm343, %v334, 0
        %v381 = vsel %vm343, %v335, 0
        %v384 = vsel %vm343, %v336, 0
        %v387 = vsel %vm343, %v337, 0
        %v390 = vsel %vm343, %v338, 0
        %392 = vmatprep.subr.mxu0 %v340
        %393 = vmatpush1.msra.mxu0 %v339
        %394 = vmatprep.subr.mxu0 0.0
        %395 = vmatpush1.msra.mxu0 0.0
        %396 = vmatprep.subr.mxu0 0.0
        %397 = vmatpush1.msra.mxu0 0.0
        %398 = vmatprep.subr.mxu0 0.0
        %399 = vmatpush1.msra.mxu0 0.0
        %400 = vmatprep.subr.mxu0 0.0
        %401 = vmatpush1.msra.mxu0 0.0
        %402 = vmatprep.subr.mxu0 0.0
        %403 = vmatpush1.msra.mxu0 0.0
        %404 = vmatprep.subr.mxu0 0.0
        %405 = vmatpush1.msra.mxu0 0.0
        %406 = vmatprep.subr.mxu0 0.0
        %407 = vmatpush1.msra.mxu0 0.0
        %408 = vmatprep.subr.mxu0 0.0
        %409 = vmatpush1.msra.mxu0 0.0
        %410 = vmatprep.subr.mxu0 0.0
        %411 = vmatpush1.msra.mxu0 0.0
        %412 = vmatprep.subr.mxu0 0.0
        %413 = vmatpush1.msra.mxu0 0.0
        %414 = vmatprep.subr.mxu0 0.0
        %415 = vmatpush1.msra.mxu0 0.0
        %416 = vmatprep.subr.mxu0 0.0
        %417 = vmatpush1.msra.mxu0 0.0
        %418 = vmatprep.subr.mxu0 0.0
        %419 = vmatpush1.msra.mxu0 0.0
        %420 = vmatprep.subr.mxu0 0.0
        %421 = vmatpush1.msra.mxu0 0.0
        %422 = vmatprep.subr.mxu0 0.0
        %423 = vmatpush1.msra.mxu0 0.0
        %424 = vmatprep.subr.mxu0 0.0
        %425 = vmatpush1.msra.mxu0 0.0
        %426 = vmatprep.subr.mxu0 0.0
        %427 = vmatpush1.msra.mxu0 0.0
        %428 = vmatprep.subr.mxu0 0.0
        %429 = vmatpush1.msra.mxu0 0.0
        %430 = vmatprep.subr.mxu0 0.0
        %431 = vmatpush1.msra.mxu0 0.0
        %432 = vmatprep.subr.mxu0 0.0
        %433 = vmatpush1.msra.mxu0 0.0
        %434 = vmatprep.subr.mxu0 0.0
        %435 = vmatpush1.msra.mxu0 0.0
        %436 = vmatprep.subr.mxu0 0.0
        %437 = vmatpush1.msra.mxu0 0.0
        %438 = vmatprep.subr.mxu0 0.0
        %439 = vmatpush1.msra.mxu0 0.0
        %440 = vmatprep.subr.mxu0 0.0
        %441 = vmatpush1.msra.mxu0 0.0
        %442 = vmatprep.subr.mxu0 0.0
        %443 = vmatpush1.msra.mxu0 0.0
        %444 = vmatprep.subr.mxu0 0.0
        %445 = vmatpush1.msra.mxu0 0.0
        %446 = vmatprep.subr.mxu0 0.0
        %447 = vmatpush1.msra.mxu0 0.0
        %448 = vmatprep.subr.mxu0 0.0
        %449 = vmatpush1.msra.mxu0 0.0
        %450 = vmatprep.subr.mxu0 0.0
        %451 = vmatpush1.msra.mxu0 0.0
        %452 = vmatprep.subr.mxu0 0.0
        %453 = vmatpush1.msra.mxu0 0.0
        %454 = vmatprep.subr.mxu0 0.0
        %455 = vmatpush1.msra.mxu0 0.0
        %456 = vmatprep.mubr.f32.mxu0 0.0
        %457 = vmatmul.mubr.f32.gmra.mrb[0].mxu0 %v345
        %v458 = vpop.f32.mrb[0].mxu0
        %v459 = vadd.f32 0.0, %v458
        %v460 = vpop.f32.mrb[0].mxu0
        %v461 = vadd.f32 0.0, %v460
        %462 = vmatprep.mubr.f32.mxu0 0.0
        %463 = vmatmul.mubr.f32.gmra.mrb[0].mxu0 %v348
        %v464 = vpop.f32.mrb[0].mxu0
        %v465 = vadd.f32 0.0, %v464
        %v466 = vpop.f32.mrb[0].mxu0
        %v467 = vadd.f32 0.0, %v466
        %468 = vmatprep.mubr.f32.mxu0 0.0
        %469 = vmatmul.mubr.f32.gmra.mrb[0].mxu0 %v351
        %v470 = vpop.f32.mrb[0].mxu0
        %v471 = vadd.f32 0.0, %v470
        %v472 = vpop.f32.mrb[0].mxu0
        %v473 = vadd.f32 0.0, %v472
        %474 = vmatprep.mubr.f32.mxu0 0.0
        %475 = vmatmul.mubr.f32.gmra.mrb[0].mxu0 %v354
        %v476 = vpop.f32.mrb[0].mxu0
        %v477 = vadd.f32 0.0, %v476
        %v478 = vpop.f32.mrb[0].mxu0
        %v479 = vadd.f32 0.0, %v478
        %480 = vmatprep.mubr.f32.mxu0 0.0
        %481 = vmatmul.mubr.f32.gmra.mrb[0].mxu0 %v357
        %v482 = vpop.f32.mrb[0].mxu0
        %v483 = vadd.f32 0.0, %v482
        %v484 = vpop.f32.mrb[0].mxu0
        %v485 = vadd.f32 0.0, %v484
        %486 = vmatprep.mubr.f32.mxu0 0.0
        %487 = vmatmul.mubr.f32.gmra.mrb[0].mxu0 %v360
        %v488 = vpop.f32.mrb[0].mxu0
        %v489 = vadd.f32 0.0, %v488
        %v490 = vpop.f32.mrb[0].mxu0
        %v491 = vadd.f32 0.0, %v490
        %492 = vmatprep.mubr.f32.mxu0 0.0
        %493 = vmatmul.mubr.f32.gmra.mrb[0].mxu0 %v363
        %v494 = vpop.f32.mrb[0].mxu0
        %v495 = vadd.f32 0.0, %v494
        %v496 = vpop.f32.mrb[0].mxu0
        %v497 = vadd.f32 0.0, %v496
        %498 = vmatprep.mubr.f32.mxu0 0.0
        %499 = vmatmul.mubr.f32.gmra.mrb[0].mxu0 %v366
        %v500 = vpop.f32.mrb[0].mxu0
        %v501 = vadd.f32 0.0, %v500
        %v502 = vpop.f32.mrb[0].mxu0
        %v503 = vadd.f32 0.0, %v502
        %504 = vmatprep.mubr.f32.mxu0 0.0
        %505 = vmatmul.mubr.f32.gmra.mrb[0].mxu0 %v369
        %v506 = vpop.f32.mrb[0].mxu0
        %v507 = vadd.f32 0.0, %v506
        %v508 = vpop.f32.mrb[0].mxu0
        %v509 = vadd.f32 0.0, %v508
        %510 = vmatprep.mubr.f32.mxu0 0.0
        %511 = vmatmul.mubr.f32.gmra.mrb[0].mxu0 %v372
        %v512 = vpop.f32.mrb[0].mxu0
        %v513 = vadd.f32 0.0, %v512
        %v514 = vpop.f32.mrb[0].mxu0
        %v515 = vadd.f32 0.0, %v514
        %516 = vmatprep.mubr.f32.mxu0 0.0
        %517 = vmatmul.mubr.f32.gmra.mrb[0].mxu0 %v375
        %v518 = vpop.f32.mrb[0].mxu0
        %v519 = vadd.f32 0.0, %v518
        %v520 = vpop.f32.mrb[0].mxu0
        %v521 = vadd.f32 0.0, %v520
        %522 = vmatprep.mubr.f32.mxu0 0.0
        %523 = vmatmul.mubr.f32.gmra.mrb[0].mxu0 %v378
        %v524 = vpop.f32.mrb[0].mxu0
        %v525 = vadd.f32 0.0, %v524
        %v526 = vpop.f32.mrb[0].mxu0
        %v527 = vadd.f32 0.0, %v526
        %528 = vmatprep.mubr.f32.mxu0 0.0
        %529 = vmatmul.mubr.f32.gmra.mrb[0].mxu0 %v381
        %v530 = vpop.f32.mrb[0].mxu0
        %v531 = vadd.f32 0.0, %v530
        %v532 = vpop.f32.mrb[0].mxu0
        %v533 = vadd.f32 0.0, %v532
        %534 = vmatprep.mubr.f32.mxu0 0.0
        %535 = vmatmul.mubr.f32.gmra.mrb[0].mxu0 %v384
        %v536 = vpop.f32.mrb[0].mxu0
        %v537 = vadd.f32 0.0, %v536
        %v538 = vpop.f32.mrb[0].mxu0
        %v539 = vadd.f32 0.0, %v538
        %540 = vmatprep.mubr.f32.mxu0 0.0
        %541 = vmatmul.mubr.f32.gmra.mrb[0].mxu0 %v387
        %v542 = vpop.f32.mrb[0].mxu0
        %v543 = vadd.f32 0.0, %v542
        %v544 = vpop.f32.mrb[0].mxu0
        %v545 = vadd.f32 0.0, %v544
        %546 = vmatprep.mubr.f32.mxu0 0.0
        %547 = vmatmul.mubr.f32.gmra.mrb[0].mxu0 %v390
        %v548 = vpop.f32.mrb[0].mxu0
        %v549 = vadd.f32 0.0, %v548
        %v550 = vpop.f32.mrb[0].mxu0
        %v551 = vadd.f32 0.0, %v550
        %552 = vdwg.mxu0
        %553 = vmatprep.subr.mxu0 %v342
        %554 = vmatpush1.msra.mxu0 %v341
        %555 = vmatprep.subr.mxu0 0.0
        %556 = vmatpush1.msra.mxu0 0.0
        %557 = vmatprep.subr.mxu0 0.0
        %558 = vmatpush1.msra.mxu0 0.0
        %559 = vmatprep.subr.mxu0 0.0
        %560 = vmatpush1.msra.mxu0 0.0
        %561 = vmatprep.subr.mxu0 0.0
        %562 = vmatpush1.msra.mxu0 0.0
        %563 = vmatprep.subr.mxu0 0.0
        %564 = vmatpush1.msra.mxu0 0.0
        %565 = vmatprep.subr.mxu0 0.0
        %566 = vmatpush1.msra.mxu0 0.0
        %567 = vmatprep.subr.mxu0 0.0
        %568 = vmatpush1.msra.mxu0 0.0
        %569 = vmatprep.subr.mxu0 0.0
        %570 = vmatpush1.msra.mxu0 0.0
        %571 = vmatprep.subr.mxu0 0.0
        %572 = vmatpush1.msra.mxu0 0.0
        %573 = vmatprep.subr.mxu0 0.0
        %574 = vmatpush1.msra.mxu0 0.0
        %575 = vmatprep.subr.mxu0 0.0
        %576 = vmatpush1.msra.mxu0 0.0
        %577 = vmatprep.subr.mxu0 0.0
        %578 = vmatpush1.msra.mxu0 0.0
        %579 = vmatprep.subr.mxu0 0.0
        %580 = vmatpush1.msra.mxu0 0.0
        %581 = vmatprep.subr.mxu0 0.0
        %582 = vmatpush1.msra.mxu0 0.0
        %583 = vmatprep.subr.mxu0 0.0
        %584 = vmatpush1.msra.mxu0 0.0
        %585 = vmatprep.subr.mxu0 0.0
        %586 = vmatpush1.msra.mxu0 0.0
        %587 = vmatprep.subr.mxu0 0.0
        %588 = vmatpush1.msra.mxu0 0.0
        %589 = vmatprep.subr.mxu0 0.0
        %590 = vmatpush1.msra.mxu0 0.0
        %591 = vmatprep.subr.mxu0 0.0
        %592 = vmatpush1.msra.mxu0 0.0
        %593 = vmatprep.subr.mxu0 0.0
        %594 = vmatpush1.msra.mxu0 0.0
        %595 = vmatprep.subr.mxu0 0.0
        %596 = vmatpush1.msra.mxu0 0.0
        %597 = vmatprep.subr.mxu0 0.0
        %598 = vmatpush1.msra.mxu0 0.0
        %599 = vmatprep.subr.mxu0 0.0
        %600 = vmatpush1.msra.mxu0 0.0
        %601 = vmatprep.subr.mxu0 0.0
        %602 = vmatpush1.msra.mxu0 0.0
        %603 = vmatprep.subr.mxu0 0.0
        %604 = vmatpush1.msra.mxu0 0.0
        %605 = vmatprep.subr.mxu0 0.0
        %606 = vmatpush1.msra.mxu0 0.0
        %607 = vmatprep.subr.mxu0 0.0
        %608 = vmatpush1.msra.mxu0 0.0
        %609 = vmatprep.subr.mxu0 0.0
        %610 = vmatpush1.msra.mxu0 0.0
        %611 = vmatprep.subr.mxu0 0.0
        %612 = vmatpush1.msra.mxu0 0.0
        %613 = vmatprep.subr.mxu0 0.0
        %614 = vmatpush1.msra.mxu0 0.0
        %615 = vmatprep.subr.mxu0 0.0
        %616 = vmatpush1.msra.mxu0 0.0
        %617 = vmatprep.mubr.f32.mxu0 0.0
        %618 = vmatmul.mubr.f32.gmra.mrb[0].mxu0 %v345
        %v619 = vpop.f32.mrb[0].mxu0
        %v620 = vadd.f32 0.0, %v619
        %v621 = vpop.f32.mrb[0].mxu0
        %v622 = vadd.f32 0.0, %v621
        %623 = vmatprep.mubr.f32.mxu0 0.0
        %624 = vmatmul.mubr.f32.gmra.mrb[0].mxu0 %v348
        %v625 = vpop.f32.mrb[0].mxu0
        %v626 = vadd.f32 0.0, %v625
        %v627 = vpop.f32.mrb[0].mxu0
        %v628 = vadd.f32 0.0, %v627
        %629 = vmatprep.mubr.f32.mxu0 0.0
        %630 = vmatmul.mubr.f32.gmra.mrb[0].mxu0 %v351
        %v631 = vpop.f32.mrb[0].mxu0
        %v632 = vadd.f32 0.0, %v631
        %v633 = vpop.f32.mrb[0].mxu0
        %v634 = vadd.f32 0.0, %v633
        %635 = vmatprep.mubr.f32.mxu0 0.0
        %636 = vmatmul.mubr.f32.gmra.mrb[0].mxu0 %v354
        %v637 = vpop.f32.mrb[0].mxu0
        %v638 = vadd.f32 0.0, %v637
        %v639 = vpop.f32.mrb[0].mxu0
        %v640 = vadd.f32 0.0, %v639
        %641 = vmatprep.mubr.f32.mxu0 0.0
        %642 = vmatmul.mubr.f32.gmra.mrb[0].mxu0 %v357
        %v643 = vpop.f32.mrb[0].mxu0
        %v644 = vadd.f32 0.0, %v643
        %v645 = vpop.f32.mrb[0].mxu0
        %v646 = vadd.f32 0.0, %v645
        %647 = vmatprep.mubr.f32.mxu0 0.0
        %648 = vmatmul.mubr.f32.gmra.mrb[0].mxu0 %v360
        %v649 = vpop.f32.mrb[0].mxu0
        %v650 = vadd.f32 0.0, %v649
        %v651 = vpop.f32.mrb[0].mxu0
        %v652 = vadd.f32 0.0, %v651
        %653 = vmatprep.mubr.f32.mxu0 0.0
        %654 = vmatmul.mubr.f32.gmra.mrb[0].mxu0 %v363
        %v655 = vpop.f32.mrb[0].mxu0
        %v656 = vadd.f32 0.0, %v655
        %v657 = vpop.f32.mrb[0].mxu0
        %v658 = vadd.f32 0.0, %v657
        %659 = vmatprep.mubr.f32.mxu0 0.0
        %660 = vmatmul.mubr.f32.gmra.mrb[0].mxu0 %v366
        %v661 = vpop.f32.mrb[0].mxu0
        %v662 = vadd.f32 0.0, %v661
        %v663 = vpop.f32.mrb[0].mxu0
        %v664 = vadd.f32 0.0, %v663
        %665 = vmatprep.mubr.f32.mxu0 0.0
        %666 = vmatmul.mubr.f32.gmra.mrb[0].mxu0 %v369
        %v667 = vpop.f32.mrb[0].mxu0
        %v668 = vadd.f32 0.0, %v667
        %v669 = vpop.f32.mrb[0].mxu0
        %v670 = vadd.f32 0.0, %v669
        %671 = vmatprep.mubr.f32.mxu0 0.0
        %672 = vmatmul.mubr.f32.gmra.mrb[0].mxu0 %v372
        %v673 = vpop.f32.mrb[0].mxu0
        %v674 = vadd.f32 0.0, %v673
        %v675 = vpop.f32.mrb[0].mxu0
        %v676 = vadd.f32 0.0, %v675
        %677 = vmatprep.mubr.f32.mxu0 0.0
        %678 = vmatmul.mubr.f32.gmra.mrb[0].mxu0 %v375
        %v679 = vpop.f32.mrb[0].mxu0
        %v680 = vadd.f32 0.0, %v679
        %v681 = vpop.f32.mrb[0].mxu0
        %v682 = vadd.f32 0.0, %v681
        %683 = vmatprep.mubr.f32.mxu0 0.0
        %684 = vmatmul.mubr.f32.gmra.mrb[0].mxu0 %v378
        %v685 = vpop.f32.mrb[0].mxu0
        %v686 = vadd.f32 0.0, %v685
        %v687 = vpop.f32.mrb[0].mxu0
        %v688 = vadd.f32 0.0, %v687
        %689 = vmatprep.mubr.f32.mxu0 0.0
        %690 = vmatmul.mubr.f32.gmra.mrb[0].mxu0 %v381
        %v691 = vpop.f32.mrb[0].mxu0
        %v692 = vadd.f32 0.0, %v691
        %v693 = vpop.f32.mrb[0].mxu0
        %v694 = vadd.f32 0.0, %v693
        %695 = vmatprep.mubr.f32.mxu0 0.0
        %696 = vmatmul.mubr.f32.gmra.mrb[0].mxu0 %v384
        %v697 = vpop.f32.mrb[0].mxu0
        %v698 = vadd.f32 0.0, %v697
        %v699 = vpop.f32.mrb[0].mxu0
        %v700 = vadd.f32 0.0, %v699
        %701 = vmatprep.mubr.f32.mxu0 0.0
        %702 = vmatmul.mubr.f32.gmra.mrb[0].mxu0 %v387
        %v703 = vpop.f32.mrb[0].mxu0
        %v704 = vadd.f32 0.0, %v703
        %v705 = vpop.f32.mrb[0].mxu0
        %v706 = vadd.f32 0.0, %v705
        %707 = vmatprep.mubr.f32.mxu0 0.0
        %708 = vmatmul.mubr.f32.gmra.mrb[0].mxu0 %v390
        %v709 = vpop.f32.mrb[0].mxu0
        %v710 = vadd.f32 0.0, %v709
        %v711 = vpop.f32.mrb[0].mxu0
        %v712 = vadd.f32 0.0, %v711
        %713 = vdwg.mxu0
        %vm714 = vcmp.lt.f32.partialorder %v459, 0.0625
        %vm715 = vcmp.lt.f32.partialorder %v461, 0.0625
        %vm716 = vcmp.lt.f32.partialorder %v620, 0.0625
        %vm717 = vcmp.lt.f32.partialorder %v622, 0.0625
        %vm718 = vcmp.lt.f32.partialorder %v465, 0.0625
        %vm719 = vcmp.lt.f32.partialorder %v467, 0.0625
        %vm720 = vcmp.lt.f32.partialorder %v626, 0.0625
        %vm721 = vcmp.lt.f32.partialorder %v628, 0.0625
        %vm722 = vcmp.lt.f32.partialorder %v471, 0.0625
        %vm723 = vcmp.lt.f32.partialorder %v473, 0.0625
        %vm724 = vcmp.lt.f32.partialorder %v632, 0.0625
        %vm725 = vcmp.lt.f32.partialorder %v634, 0.0625
        %vm726 = vcmp.lt.f32.partialorder %v477, 0.0625
        %vm727 = vcmp.lt.f32.partialorder %v479, 0.0625
        %vm728 = vcmp.lt.f32.partialorder %v638, 0.0625
        %vm729 = vcmp.lt.f32.partialorder %v640, 0.0625
        %vm730 = vcmp.lt.f32.partialorder %v483, 0.0625
        %vm731 = vcmp.lt.f32.partialorder %v485, 0.0625
        %vm732 = vcmp.lt.f32.partialorder %v644, 0.0625
        %vm733 = vcmp.lt.f32.partialorder %v646, 0.0625
        %vm734 = vcmp.lt.f32.partialorder %v489, 0.0625
        %vm735 = vcmp.lt.f32.partialorder %v491, 0.0625
        %vm736 = vcmp.lt.f32.partialorder %v650, 0.0625
        %vm737 = vcmp.lt.f32.partialorder %v652, 0.0625
        %vm738 = vcmp.lt.f32.partialorder %v495, 0.0625
        %vm739 = vcmp.lt.f32.partialorder %v497, 0.0625
        %vm740 = vcmp.lt.f32.partialorder %v656, 0.0625
        %vm741 = vcmp.lt.f32.partialorder %v658, 0.0625
        %vm742 = vcmp.lt.f32.partialorder %v501, 0.0625
        %vm743 = vcmp.lt.f32.partialorder %v503, 0.0625
        %vm744 = vcmp.lt.f32.partialorder %v662, 0.0625
        %vm745 = vcmp.lt.f32.partialorder %v664, 0.0625
        %vm746 = vcmp.lt.f32.partialorder %v507, 0.0625
        %vm747 = vcmp.lt.f32.partialorder %v509, 0.0625
        %vm748 = vcmp.lt.f32.partialorder %v668, 0.0625
        %vm749 = vcmp.lt.f32.partialorder %v670, 0.0625
        %vm750 = vcmp.lt.f32.partialorder %v513, 0.0625
        %vm751 = vcmp.lt.f32.partialorder %v515, 0.0625
        %vm752 = vcmp.lt.f32.partialorder %v674, 0.0625
        %vm753 = vcmp.lt.f32.partialorder %v676, 0.0625
        %vm754 = vcmp.lt.f32.partialorder %v519, 0.0625
        %vm755 = vcmp.lt.f32.partialorder %v521, 0.0625
        %vm756 = vcmp.lt.f32.partialorder %v680, 0.0625
        %vm757 = vcmp.lt.f32.partialorder %v682, 0.0625
        %vm758 = vcmp.lt.f32.partialorder %v525, 0.0625
        %vm759 = vcmp.lt.f32.partialorder %v527, 0.0625
        %vm760 = vcmp.lt.f32.partialorder %v686, 0.0625
        %vm761 = vcmp.lt.f32.partialorder %v688, 0.0625
        %vm762 = vcmp.lt.f32.partialorder %v531, 0.0625
        %vm763 = vcmp.lt.f32.partialorder %v533, 0.0625
        %vm764 = vcmp.lt.f32.partialorder %v692, 0.0625
        %vm765 = vcmp.lt.f32.partialorder %v694, 0.0625
        %vm766 = vcmp.lt.f32.partialorder %v537, 0.0625
        %vm767 = vcmp.lt.f32.partialorder %v539, 0.0625
        %vm768 = vcmp.lt.f32.partialorder %v698, 0.0625
        %vm769 = vcmp.lt.f32.partialorder %v700, 0.0625
        %vm770 = vcmp.lt.f32.partialorder %v543, 0.0625
        %vm771 = vcmp.lt.f32.partialorder %v545, 0.0625
        %vm772 = vcmp.lt.f32.partialorder %v704, 0.0625
        %vm773 = vcmp.lt.f32.partialorder %v706, 0.0625
        %vm774 = vcmp.lt.f32.partialorder %v549, 0.0625
        %vm775 = vcmp.lt.f32.partialorder %v551, 0.0625
        %vm776 = vcmp.lt.f32.partialorder %v710, 0.0625
        %vm777 = vcmp.lt.f32.partialorder %v712, 0.0625
        %v778 = vsel %vm714, 1, 0
        %v779 = vsel %vm715, 1, 0
        %v780 = vsel %vm716, 1, 0
        %v781 = vsel %vm717, 1, 0
        %v782 = vsel %vm718, 1, 0
        %v783 = vsel %vm719, 1, 0
        %v784 = vsel %vm720, 1, 0
        %v785 = vsel %vm721, 1, 0
        %v786 = vsel %vm722, 1, 0
        %v787 = vsel %vm723, 1, 0
        %v788 = vsel %vm724, 1, 0
        %v789 = vsel %vm725, 1, 0
        %v790 = vsel %vm726, 1, 0
        %v791 = vsel %vm727, 1, 0
        %v792 = vsel %vm728, 1, 0
        %v793 = vsel %vm729, 1, 0
        %v794 = vsel %vm730, 1, 0
        %v795 = vsel %vm731, 1, 0
        %v796 = vsel %vm732, 1, 0
        %v797 = vsel %vm733, 1, 0
        %v798 = vsel %vm734, 1, 0
        %v799 = vsel %vm735, 1, 0
        %v800 = vsel %vm736, 1, 0
        %v801 = vsel %vm737, 1, 0
        %v802 = vsel %vm738, 1, 0
        %v803 = vsel %vm739, 1, 0
        %v804 = vsel %vm740, 1, 0
        %v805 = vsel %vm741, 1, 0
        %v806 = vsel %vm742, 1, 0
        %v807 = vsel %vm743, 1, 0
        %v808 = vsel %vm744, 1, 0
        %v809 = vsel %vm745, 1, 0
        %v810 = vsel %vm746, 1, 0
        %v811 = vsel %vm747, 1, 0
        %v812 = vsel %vm748, 1, 0
        %v813 = vsel %vm749, 1, 0
        %v814 = vsel %vm750, 1, 0
        %v815 = vsel %vm751, 1, 0
        %v816 = vsel %vm752, 1, 0
        %v817 = vsel %vm753, 1, 0
        %v818 = vsel %vm754, 1, 0
        %v819 = vsel %vm755, 1, 0
        %v820 = vsel %vm756, 1, 0
        %v821 = vsel %vm757, 1, 0
        %v822 = vsel %vm758, 1, 0
        %v823 = vsel %vm759, 1, 0
        %v824 = vsel %vm760, 1, 0
        %v825 = vsel %vm761, 1, 0
        %v826 = vsel %vm762, 1, 0
        %v827 = vsel %vm763, 1, 0
        %v828 = vsel %vm764, 1, 0
        %v829 = vsel %vm765, 1, 0
        %v830 = vsel %vm766, 1, 0
        %v831 = vsel %vm767, 1, 0
        %v832 = vsel %vm768, 1, 0
        %v833 = vsel %vm769, 1, 0
        %v834 = vsel %vm770, 1, 0
        %v835 = vsel %vm771, 1, 0
        %v836 = vsel %vm772, 1, 0
        %v837 = vsel %vm773, 1, 0
        %v838 = vsel %vm774, 1, 0
        %v839 = vsel %vm775, 1, 0
        %v840 = vsel %vm776, 1, 0
        %v841 = vsel %vm777, 1, 0
        %v842 = vcvt.s32.f32 %v778
        %v843 = vcvt.s32.f32 %v779
        %v844 = vcvt.s32.f32 %v780
        %v845 = vcvt.s32.f32 %v781
        %v846 = vcvt.s32.f32 %v782
        %v847 = vcvt.s32.f32 %v783
        %v848 = vcvt.s32.f32 %v784
        %v849 = vcvt.s32.f32 %v785
        %v850 = vcvt.s32.f32 %v786
        %v851 = vcvt.s32.f32 %v787
        %v852 = vcvt.s32.f32 %v788
        %v853 = vcvt.s32.f32 %v789
        %v854 = vcvt.s32.f32 %v790
        %v855 = vcvt.s32.f32 %v791
        %v856 = vcvt.s32.f32 %v792
        %v857 = vcvt.s32.f32 %v793
        %v858 = vcvt.s32.f32 %v794
        %v859 = vcvt.s32.f32 %v795
        %v860 = vcvt.s32.f32 %v796
        %v861 = vcvt.s32.f32 %v797
        %v862 = vcvt.s32.f32 %v798
        %v863 = vcvt.s32.f32 %v799
        %v864 = vcvt.s32.f32 %v800
        %v865 = vcvt.s32.f32 %v801
        %v866 = vcvt.s32.f32 %v802
        %v867 = vcvt.s32.f32 %v803
        %v868 = vcvt.s32.f32 %v804
        %v869 = vcvt.s32.f32 %v805
        %v870 = vcvt.s32.f32 %v806
        %v871 = vcvt.s32.f32 %v807
        %v872 = vcvt.s32.f32 %v808
        %v873 = vcvt.s32.f32 %v809
        %v874 = vcvt.s32.f32 %v810
        %v875 = vcvt.s32.f32 %v811
        %v876 = vcvt.s32.f32 %v812
        %v877 = vcvt.s32.f32 %v813
        %v878 = vcvt.s32.f32 %v814
        %v879 = vcvt.s32.f32 %v815
        %v880 = vcvt.s32.f32 %v816
        %v881 = vcvt.s32.f32 %v817
        %v882 = vcvt.s32.f32 %v818
        %v883 = vcvt.s32.f32 %v819
        %v884 = vcvt.s32.f32 %v820
        %v885 = vcvt.s32.f32 %v821
        %v886 = vcvt.s32.f32 %v822
        %v887 = vcvt.s32.f32 %v823
        %v888 = vcvt.s32.f32 %v824
        %v889 = vcvt.s32.f32 %v825
        %v890 = vcvt.s32.f32 %v826
        %v891 = vcvt.s32.f32 %v827
        %v892 = vcvt.s32.f32 %v828
        %v893 = vcvt.s32.f32 %v829
        %v894 = vcvt.s32.f32 %v830
        %v895 = vcvt.s32.f32 %v831
        %v896 = vcvt.s32.f32 %v832
        %v897 = vcvt.s32.f32 %v833
        %v898 = vcvt.s32.f32 %v834
        %v899 = vcvt.s32.f32 %v835
        %v900 = vcvt.s32.f32 %v836
        %v901 = vcvt.s32.f32 %v837
        %v902 = vcvt.s32.f32 %v838
        %v903 = vcvt.s32.f32 %v839
        %v904 = vcvt.s32.f32 %v840
        %v905 = vcvt.s32.f32 %v841
        %v906 = vld [vmem:[%s298] sm:$0xff]
        %v907 = vld [vmem:[%s298 + $0x8] sm:$0xff]
        %v908 = vld [vmem:[%s298 + $0x10] sm:$0xff]
        %v909 = vld [vmem:[%s298 + $0x18] sm:$0xff]
        %v910 = vld [vmem:[%s298 + $0x20] sm:$0xff]
        %v911 = vld [vmem:[%s298 + $0x28] sm:$0xff]
        %v912 = vld [vmem:[%s298 + $0x30] sm:$0xff]
        %v913 = vld [vmem:[%s298 + $0x38] sm:$0xff]
        %v914 = vld [vmem:[%s298 + $0x40] sm:$0xff]
        %v915 = vld [vmem:[%s298 + $0x48] sm:$0xff]
        %v916 = vld [vmem:[%s298 + $0x50] sm:$0xff]
        %v917 = vld [vmem:[%s298 + $0x58] sm:$0xff]
        %v918 = vld [vmem:[%s298 + $0x60] sm:$0xff]
        %v919 = vld [vmem:[%s298 + $0x68] sm:$0xff]
        %v920 = vld [vmem:[%s298 + $0x70] sm:$0xff]
        %v921 = vld [vmem:[%s298 + $0x78] sm:$0xff]
        %v922 = vld [vmem:[%s309] sm:$0xf]
        %924 = vset.pattern.permute.xlu0 0
        %925 = vperm.xlu0 %924, %v906
        %v926 = vpop.permute.xlu0 %925
        %929 = vset.pattern.permute.xlu0 0
        %930 = vperm.xlu0 %929, %v907
        %v931 = vpop.permute.xlu0 %930
        %934 = vset.pattern.permute.xlu0 0
        %935 = vperm.xlu0 %934, %v908
        %v936 = vpop.permute.xlu0 %935
        %939 = vset.pattern.permute.xlu0 0
        %940 = vperm.xlu0 %939, %v909
        %v941 = vpop.permute.xlu0 %940
        %944 = vset.pattern.permute.xlu0 0
        %945 = vperm.xlu0 %944, %v910
        %v946 = vpop.permute.xlu0 %945
        %949 = vset.pattern.permute.xlu0 0
        %950 = vperm.xlu0 %949, %v911
        %v951 = vpop.permute.xlu0 %950
        %954 = vset.pattern.permute.xlu0 0
        %955 = vperm.xlu0 %954, %v912
        %v956 = vpop.permute.xlu0 %955
        %959 = vset.pattern.permute.xlu0 0
        %960 = vperm.xlu0 %959, %v913
        %v961 = vpop.permute.xlu0 %960
        %964 = vset.pattern.permute.xlu0 0
        %965 = vperm.xlu0 %964, %v914
        %v966 = vpop.permute.xlu0 %965
        %969 = vset.pattern.permute.xlu0 0
        %970 = vperm.xlu0 %969, %v915
        %v971 = vpop.permute.xlu0 %970
        %974 = vset.pattern.permute.xlu0 0
        %975 = vperm.xlu0 %974, %v916
        %v976 = vpop.permute.xlu0 %975
        %979 = vset.pattern.permute.xlu0 0
        %980 = vperm.xlu0 %979, %v917
        %v981 = vpop.permute.xlu0 %980
        %984 = vset.pattern.permute.xlu0 0
        %985 = vperm.xlu0 %984, %v918
        %v986 = vpop.permute.xlu0 %985
        %989 = vset.pattern.permute.xlu0 0
        %990 = vperm.xlu0 %989, %v919
        %v991 = vpop.permute.xlu0 %990
        %994 = vset.pattern.permute.xlu0 0
        %995 = vperm.xlu0 %994, %v920
        %v996 = vpop.permute.xlu0 %995
        %999 = vset.pattern.permute.xlu0 0
        %1000 = vperm.xlu0 %999, %v921
        %v1001 = vpop.permute.xlu0 %1000
        %v1004 = vlaneseq
        %v1005 = vshrl.u32 %v1004, 7
        %v1006 = vsub.s32 0, %v1005
        %v1007 = vrot.slane %v922, %v1006
        %v1008 = vlaneseq
        %v1009 = vshrl.u32 %v1008, 7
        %v1010 = vsub.s32 1, %v1009
        %v1011 = vrot.slane %v922, %v1010
        %v1012 = vlaneseq
        %v1013 = vshrl.u32 %v1012, 7
        %v1014 = vsub.s32 2, %v1013
        %v1015 = vrot.slane %v922, %v1014
        %v1016 = vlaneseq
        %v1017 = vshrl.u32 %v1016, 7
        %v1018 = vsub.s32 3, %v1017
        %v1019 = vrot.slane %v922, %v1018
        %v1024 = vsub.f32 %v926, %v1007
        %v1025 = vsub.f32 %v926, %v1011
        %v1026 = vsub.f32 %v926, %v1015
        %v1027 = vsub.f32 %v926, %v1019
        %v1028 = vsub.f32 %v931, %v1007
        %v1029 = vsub.f32 %v931, %v1011
        %v1030 = vsub.f32 %v931, %v1015
        %v1031 = vsub.f32 %v931, %v1019
        %v1032 = vsub.f32 %v936, %v1007
        %v1033 = vsub.f32 %v936, %v1011
        %v1034 = vsub.f32 %v936, %v1015
        %v1035 = vsub.f32 %v936, %v1019
        %v1036 = vsub.f32 %v941, %v1007
        %v1037 = vsub.f32 %v941, %v1011
        %v1038 = vsub.f32 %v941, %v1015
        %v1039 = vsub.f32 %v941, %v1019
        %v1040 = vsub.f32 %v946, %v1007
        %v1041 = vsub.f32 %v946, %v1011
        %v1042 = vsub.f32 %v946, %v1015
        %v1043 = vsub.f32 %v946, %v1019
        %v1044 = vsub.f32 %v951, %v1007
        %v1045 = vsub.f32 %v951, %v1011
        %v1046 = vsub.f32 %v951, %v1015
        %v1047 = vsub.f32 %v951, %v1019
        %v1048 = vsub.f32 %v956, %v1007
        %v1049 = vsub.f32 %v956, %v1011
        %v1050 = vsub.f32 %v956, %v1015
        %v1051 = vsub.f32 %v956, %v1019
        %v1052 = vsub.f32 %v961, %v1007
        %v1053 = vsub.f32 %v961, %v1011
        %v1054 = vsub.f32 %v961, %v1015
        %v1055 = vsub.f32 %v961, %v1019
        %v1056 = vsub.f32 %v966, %v1007
        %v1057 = vsub.f32 %v966, %v1011
        %v1058 = vsub.f32 %v966, %v1015
        %v1059 = vsub.f32 %v966, %v1019
        %v1060 = vsub.f32 %v971, %v1007
        %v1061 = vsub.f32 %v971, %v1011
        %v1062 = vsub.f32 %v971, %v1015
        %v1063 = vsub.f32 %v971, %v1019
        %v1064 = vsub.f32 %v976, %v1007
        %v1065 = vsub.f32 %v976, %v1011
        %v1066 = vsub.f32 %v976, %v1015
        %v1067 = vsub.f32 %v976, %v1019
        %v1068 = vsub.f32 %v981, %v1007
        %v1069 = vsub.f32 %v981, %v1011
        %v1070 = vsub.f32 %v981, %v1015
        %v1071 = vsub.f32 %v981, %v1019
        %v1072 = vsub.f32 %v986, %v1007
        %v1073 = vsub.f32 %v986, %v1011
        %v1074 = vsub.f32 %v986, %v1015
        %v1075 = vsub.f32 %v986, %v1019
        %v1076 = vsub.f32 %v991, %v1007
        %v1077 = vsub.f32 %v991, %v1011
        %v1078 = vsub.f32 %v991, %v1015
        %v1079 = vsub.f32 %v991, %v1019
        %v1080 = vsub.f32 %v996, %v1007
        %v1081 = vsub.f32 %v996, %v1011
        %v1082 = vsub.f32 %v996, %v1015
        %v1083 = vsub.f32 %v996, %v1019
        %v1084 = vsub.f32 %v1001, %v1007
        %v1085 = vsub.f32 %v1001, %v1011
        %v1086 = vsub.f32 %v1001, %v1015
        %v1087 = vsub.f32 %v1001, %v1019
        %v1088 = vmul.f32 %v842, %v1024
        %v1089 = vmul.f32 %v843, %v1025
        %v1090 = vmul.f32 %v844, %v1026
        %v1091 = vmul.f32 %v845, %v1027
        %v1092 = vmul.f32 %v846, %v1028
        %v1093 = vmul.f32 %v847, %v1029
        %v1094 = vmul.f32 %v848, %v1030
        %v1095 = vmul.f32 %v849, %v1031
        %v1096 = vmul.f32 %v850, %v1032
        %v1097 = vmul.f32 %v851, %v1033
        %v1098 = vmul.f32 %v852, %v1034
        %v1099 = vmul.f32 %v853, %v1035
        %v1100 = vmul.f32 %v854, %v1036
        %v1101 = vmul.f32 %v855, %v1037
        %v1102 = vmul.f32 %v856, %v1038
        %v1103 = vmul.f32 %v857, %v1039
        %v1104 = vmul.f32 %v858, %v1040
        %v1105 = vmul.f32 %v859, %v1041
        %v1106 = vmul.f32 %v860, %v1042
        %v1107 = vmul.f32 %v861, %v1043
        %v1108 = vmul.f32 %v862, %v1044
        %v1109 = vmul.f32 %v863, %v1045
        %v1110 = vmul.f32 %v864, %v1046
        %v1111 = vmul.f32 %v865, %v1047
        %v1112 = vmul.f32 %v866, %v1048
        %v1113 = vmul.f32 %v867, %v1049
        %v1114 = vmul.f32 %v868, %v1050
        %v1115 = vmul.f32 %v869, %v1051
        %v1116 = vmul.f32 %v870, %v1052
        %v1117 = vmul.f32 %v871, %v1053
        %v1118 = vmul.f32 %v872, %v1054
        %v1119 = vmul.f32 %v873, %v1055
        %v1120 = vmul.f32 %v874, %v1056
        %v1121 = vmul.f32 %v875, %v1057
        %v1122 = vmul.f32 %v876, %v1058
        %v1123 = vmul.f32 %v877, %v1059
        %v1124 = vmul.f32 %v878, %v1060
        %v1125 = vmul.f32 %v879, %v1061
        %v1126 = vmul.f32 %v880, %v1062
        %v1127 = vmul.f32 %v881, %v1063
        %v1128 = vmul.f32 %v882, %v1064
        %v1129 = vmul.f32 %v883, %v1065
        %v1130 = vmul.f32 %v884, %v1066
        %v1131 = vmul.f32 %v885, %v1067
        %v1132 = vmul.f32 %v886, %v1068
        %v1133 = vmul.f32 %v887, %v1069
        %v1134 = vmul.f32 %v888, %v1070
        %v1135 = vmul.f32 %v889, %v1071
        %v1136 = vmul.f32 %v890, %v1072
        %v1137 = vmul.f32 %v891, %v1073
        %v1138 = vmul.f32 %v892, %v1074
        %v1139 = vmul.f32 %v893, %v1075
        %v1140 = vmul.f32 %v894, %v1076
        %v1141 = vmul.f32 %v895, %v1077
        %v1142 = vmul.f32 %v896, %v1078
        %v1143 = vmul.f32 %v897, %v1079
        %v1144 = vmul.f32 %v898, %v1080
        %v1145 = vmul.f32 %v899, %v1081
        %v1146 = vmul.f32 %v900, %v1082
        %v1147 = vmul.f32 %v901, %v1083
        %v1148 = vmul.f32 %v902, %v1084
        %v1149 = vmul.f32 %v903, %v1085
        %v1150 = vmul.f32 %v904, %v1086
        %v1151 = vmul.f32 %v905, %v1087
        %v1152 = vld [vmem:[%s280] sm:$0xf]
        %v1153 = vmul.f32 %v1088, %v1024
        %v1154 = vmul.f32 %v1089, %v1025
        %v1155 = vmul.f32 %v1090, %v1026
        %v1156 = vmul.f32 %v1091, %v1027
        %v1157 = vmul.f32 %v1092, %v1028
        %v1158 = vmul.f32 %v1093, %v1029
        %v1159 = vmul.f32 %v1094, %v1030
        %v1160 = vmul.f32 %v1095, %v1031
        %v1161 = vmul.f32 %v1096, %v1032
        %v1162 = vmul.f32 %v1097, %v1033
        %v1163 = vmul.f32 %v1098, %v1034
        %v1164 = vmul.f32 %v1099, %v1035
        %v1165 = vmul.f32 %v1100, %v1036
        %v1166 = vmul.f32 %v1101, %v1037
        %v1167 = vmul.f32 %v1102, %v1038
        %v1168 = vmul.f32 %v1103, %v1039
        %v1169 = vmul.f32 %v1104, %v1040
        %v1170 = vmul.f32 %v1105, %v1041
        %v1171 = vmul.f32 %v1106, %v1042
        %v1172 = vmul.f32 %v1107, %v1043
        %v1173 = vmul.f32 %v1108, %v1044
        %v1174 = vmul.f32 %v1109, %v1045
        %v1175 = vmul.f32 %v1110, %v1046
        %v1176 = vmul.f32 %v1111, %v1047
        %v1177 = vmul.f32 %v1112, %v1048
        %v1178 = vmul.f32 %v1113, %v1049
        %v1179 = vmul.f32 %v1114, %v1050
        %v1180 = vmul.f32 %v1115, %v1051
        %v1181 = vmul.f32 %v1116, %v1052
        %v1182 = vmul.f32 %v1117, %v1053
        %v1183 = vmul.f32 %v1118, %v1054
        %v1184 = vmul.f32 %v1119, %v1055
        %v1185 = vmul.f32 %v1120, %v1056
        %v1186 = vmul.f32 %v1121, %v1057
        %v1187 = vmul.f32 %v1122, %v1058
        %v1188 = vmul.f32 %v1123, %v1059
        %v1189 = vmul.f32 %v1124, %v1060
        %v1190 = vmul.f32 %v1125, %v1061
        %v1191 = vmul.f32 %v1126, %v1062
        %v1192 = vmul.f32 %v1127, %v1063
        %v1193 = vmul.f32 %v1128, %v1064
        %v1194 = vmul.f32 %v1129, %v1065
        %v1195 = vmul.f32 %v1130, %v1066
        %v1196 = vmul.f32 %v1131, %v1067
        %v1197 = vmul.f32 %v1132, %v1068
        %v1198 = vmul.f32 %v1133, %v1069
        %v1199 = vmul.f32 %v1134, %v1070
        %v1200 = vmul.f32 %v1135, %v1071
        %v1201 = vmul.f32 %v1136, %v1072
        %v1202 = vmul.f32 %v1137, %v1073
        %v1203 = vmul.f32 %v1138, %v1074
        %v1204 = vmul.f32 %v1139, %v1075
        %v1205 = vmul.f32 %v1140, %v1076
        %v1206 = vmul.f32 %v1141, %v1077
        %v1207 = vmul.f32 %v1142, %v1078
        %v1208 = vmul.f32 %v1143, %v1079
        %v1209 = vmul.f32 %v1144, %v1080
        %v1210 = vmul.f32 %v1145, %v1081
        %v1211 = vmul.f32 %v1146, %v1082
        %v1212 = vmul.f32 %v1147, %v1083
        %v1213 = vmul.f32 %v1148, %v1084
        %v1214 = vmul.f32 %v1149, %v1085
        %v1215 = vmul.f32 %v1150, %v1086
        %v1216 = vmul.f32 %v1151, %v1087
        %v1217 = vadd.f32 %v1153, %v1157
        %v1218 = vadd.f32 %v1217, %v1161
        %v1219 = vadd.f32 %v1218, %v1165
        %v1220 = vadd.f32 %v1219, %v1169
        %v1221 = vadd.f32 %v1220, %v1173
        %v1222 = vadd.f32 %v1221, %v1177
        %v1223 = vadd.f32 %v1222, %v1181
        %v1224 = vadd.f32 %v1223, %v1185
        %v1225 = vadd.f32 %v1224, %v1189
        %v1226 = vadd.f32 %v1225, %v1193
        %v1227 = vadd.f32 %v1226, %v1197
        %v1228 = vadd.f32 %v1227, %v1201
        %v1229 = vadd.f32 %v1228, %v1205
        %v1230 = vadd.f32 %v1229, %v1209
        %v1231 = vadd.f32 %v1230, %v1213
        %v1232 = vrot.slane %v1231, 4
        %v1233 = vadd.f32 %v1231, %v1232
        %v1234 = vrot.slane %v1233, 2
        %v1235 = vadd.f32 %v1233, %v1234
        %v1236 = vrot.slane %v1235, 1
        %v1237 = vadd.f32 %v1235, %v1236
        %v1238 = vadd.f32 %v1154, %v1158
        %v1239 = vadd.f32 %v1238, %v1162
        %v1240 = vadd.f32 %v1239, %v1166
        %v1241 = vadd.f32 %v1240, %v1170
        %v1242 = vadd.f32 %v1241, %v1174
        %v1243 = vadd.f32 %v1242, %v1178
        %v1244 = vadd.f32 %v1243, %v1182
        %v1245 = vadd.f32 %v1244, %v1186
        %v1246 = vadd.f32 %v1245, %v1190
        %v1247 = vadd.f32 %v1246, %v1194
        %v1248 = vadd.f32 %v1247, %v1198
        %v1249 = vadd.f32 %v1248, %v1202
        %v1250 = vadd.f32 %v1249, %v1206
        %v1251 = vadd.f32 %v1250, %v1210
        %v1252 = vadd.f32 %v1251, %v1214
        %v1253 = vrot.slane %v1252, 4
        %v1254 = vadd.f32 %v1252, %v1253
        %v1255 = vrot.slane %v1254, 2
        %v1256 = vadd.f32 %v1254, %v1255
        %v1257 = vrot.slane %v1256, 1
        %v1258 = vadd.f32 %v1256, %v1257
        %v1259 = vadd.f32 %v1155, %v1159
        %v1260 = vadd.f32 %v1259, %v1163
        %v1261 = vadd.f32 %v1260, %v1167
        %v1262 = vadd.f32 %v1261, %v1171
        %v1263 = vadd.f32 %v1262, %v1175
        %v1264 = vadd.f32 %v1263, %v1179
        %v1265 = vadd.f32 %v1264, %v1183
        %v1266 = vadd.f32 %v1265, %v1187
        %v1267 = vadd.f32 %v1266, %v1191
        %v1268 = vadd.f32 %v1267, %v1195
        %v1269 = vadd.f32 %v1268, %v1199
        %v1270 = vadd.f32 %v1269, %v1203
        %v1271 = vadd.f32 %v1270, %v1207
        %v1272 = vadd.f32 %v1271, %v1211
        %v1273 = vadd.f32 %v1272, %v1215
        %v1274 = vrot.slane %v1273, 4
        %v1275 = vadd.f32 %v1273, %v1274
        %v1276 = vrot.slane %v1275, 2
        %v1277 = vadd.f32 %v1275, %v1276
        %v1278 = vrot.slane %v1277, 1
        %v1279 = vadd.f32 %v1277, %v1278
        %v1280 = vadd.f32 %v1156, %v1160
        %v1281 = vadd.f32 %v1280, %v1164
        %v1282 = vadd.f32 %v1281, %v1168
        %v1283 = vadd.f32 %v1282, %v1172
        %v1284 = vadd.f32 %v1283, %v1176
        %v1285 = vadd.f32 %v1284, %v1180
        %v1286 = vadd.f32 %v1285, %v1184
        %v1287 = vadd.f32 %v1286, %v1188
        %v1288 = vadd.f32 %v1287, %v1192
        %v1289 = vadd.f32 %v1288, %v1196
        %v1290 = vadd.f32 %v1289, %v1200
        %v1291 = vadd.f32 %v1290, %v1204
        %v1292 = vadd.f32 %v1291, %v1208
        %v1293 = vadd.f32 %v1292, %v1212
        %v1294 = vadd.f32 %v1293, %v1216
        %v1295 = vrot.slane %v1294, 4
        %v1296 = vadd.f32 %v1294, %v1295
        %v1297 = vrot.slane %v1296, 2
        %v1298 = vadd.f32 %v1296, %v1297
        %v1299 = vrot.slane %v1298, 1
        %v1300 = vadd.f32 %v1298, %v1299
        %v1305 = vcombine.low %v1237, %v1258
        %v1306 = vcombine.low %v1279, %v1300
        %v1308 = vunpack.c.l.s4 1966171168
        %v1309 = vunpack.c.0.s8 %v1308
        %v1310 = vlaneseq
        %v1311 = vshrl.u32 %v1310, 7
        %v1312 = vsub.s32 %v1309, %v1311
        %v1313 = vrot.slane %v1305, %v1312
        %v1315 = vunpack.c.l.s4 1966171168
        %v1316 = vunpack.c.0.s8 %v1315
        %v1317 = vlaneseq
        %v1318 = vshrl.u32 %v1317, 7
        %v1319 = vsub.s32 %v1316, %v1318
        %v1320 = vrot.slane %v1306, %v1319
        %v1321 = vcombine.low %v1313, %v1320
        %v1323 = vunpack.c.l.s4 1966171168
        %v1324 = vunpack.c.0.s8 %v1323
        %v1325 = vlaneseq
        %v1326 = vshrl.u32 %v1325, 7
        %v1327 = vsub.s32 %v1324, %v1326
        %v1328 = vrot.slane %v1321, %v1327
        %v1330 = vadd.f32 %v1152, %v1328
        %v1331 = vlaneseq
        %vm1332 = vcmp.ge.s32.totalorder %v1331, 0
        %vm1333 = vcmp.lt.s32.totalorder %v1331, 512
        %vm1334 = vmand %vm1332, %vm1333
        %1335 = vst.msk [vmem:[%s280] sm:$0xf] %vm1334, %v1330
        %v1336 = vld [vmem:[%s287] sm:$0xf]
        %v1337 = vadd.f32 %v842, %v846
        %v1338 = vadd.f32 %v1337, %v850
        %v1339 = vadd.f32 %v1338, %v854
        %v1340 = vadd.f32 %v1339, %v858
        %v1341 = vadd.f32 %v1340, %v862
        %v1342 = vadd.f32 %v1341, %v866
        %v1343 = vadd.f32 %v1342, %v870
        %v1344 = vadd.f32 %v1343, %v874
        %v1345 = vadd.f32 %v1344, %v878
        %v1346 = vadd.f32 %v1345, %v882
        %v1347 = vadd.f32 %v1346, %v886
        %v1348 = vadd.f32 %v1347, %v890
        %v1349 = vadd.f32 %v1348, %v894
        %v1350 = vadd.f32 %v1349, %v898
        %v1351 = vadd.f32 %v1350, %v902
        %v1352 = vrot.slane %v1351, 4
        %v1353 = vadd.f32 %v1351, %v1352
        %v1354 = vrot.slane %v1353, 2
        %v1355 = vadd.f32 %v1353, %v1354
        %v1356 = vrot.slane %v1355, 1
        %v1357 = vadd.f32 %v1355, %v1356
        %v1358 = vadd.f32 %v843, %v847
        %v1359 = vadd.f32 %v1358, %v851
        %v1360 = vadd.f32 %v1359, %v855
        %v1361 = vadd.f32 %v1360, %v859
        %v1362 = vadd.f32 %v1361, %v863
        %v1363 = vadd.f32 %v1362, %v867
        %v1364 = vadd.f32 %v1363, %v871
        %v1365 = vadd.f32 %v1364, %v875
        %v1366 = vadd.f32 %v1365, %v879
        %v1367 = vadd.f32 %v1366, %v883
        %v1368 = vadd.f32 %v1367, %v887
        %v1369 = vadd.f32 %v1368, %v891
        %v1370 = vadd.f32 %v1369, %v895
        %v1371 = vadd.f32 %v1370, %v899
        %v1372 = vadd.f32 %v1371, %v903
        %v1373 = vrot.slane %v1372, 4
        %v1374 = vadd.f32 %v1372, %v1373
        %v1375 = vrot.slane %v1374, 2
        %v1376 = vadd.f32 %v1374, %v1375
        %v1377 = vrot.slane %v1376, 1
        %v1378 = vadd.f32 %v1376, %v1377
        %v1379 = vadd.f32 %v844, %v848
        %v1380 = vadd.f32 %v1379, %v852
        %v1381 = vadd.f32 %v1380, %v856
        %v1382 = vadd.f32 %v1381, %v860
        %v1383 = vadd.f32 %v1382, %v864
        %v1384 = vadd.f32 %v1383, %v868
        %v1385 = vadd.f32 %v1384, %v872
        %v1386 = vadd.f32 %v1385, %v876
        %v1387 = vadd.f32 %v1386, %v880
        %v1388 = vadd.f32 %v1387, %v884
        %v1389 = vadd.f32 %v1388, %v888
        %v1390 = vadd.f32 %v1389, %v892
        %v1391 = vadd.f32 %v1390, %v896
        %v1392 = vadd.f32 %v1391, %v900
        %v1393 = vadd.f32 %v1392, %v904
        %v1394 = vrot.slane %v1393, 4
        %v1395 = vadd.f32 %v1393, %v1394
        %v1396 = vrot.slane %v1395, 2
        %v1397 = vadd.f32 %v1395, %v1396
        %v1398 = vrot.slane %v1397, 1
        %v1399 = vadd.f32 %v1397, %v1398
        %v1400 = vadd.f32 %v845, %v849
        %v1401 = vadd.f32 %v1400, %v853
        %v1402 = vadd.f32 %v1401, %v857
        %v1403 = vadd.f32 %v1402, %v861
        %v1404 = vadd.f32 %v1403, %v865
        %v1405 = vadd.f32 %v1404, %v869
        %v1406 = vadd.f32 %v1405, %v873
        %v1407 = vadd.f32 %v1406, %v877
        %v1408 = vadd.f32 %v1407, %v881
        %v1409 = vadd.f32 %v1408, %v885
        %v1410 = vadd.f32 %v1409, %v889
        %v1411 = vadd.f32 %v1410, %v893
        %v1412 = vadd.f32 %v1411, %v897
        %v1413 = vadd.f32 %v1412, %v901
        %v1414 = vadd.f32 %v1413, %v905
        %v1415 = vrot.slane %v1414, 4
        %v1416 = vadd.f32 %v1414, %v1415
        %v1417 = vrot.slane %v1416, 2
        %v1418 = vadd.f32 %v1416, %v1417
        %v1419 = vrot.slane %v1418, 1
        %v1420 = vadd.f32 %v1418, %v1419
        %v1425 = vcombine.low %v1357, %v1378
        %v1426 = vcombine.low %v1399, %v1420
        %v1428 = vunpack.c.l.s4 1966171168
        %v1429 = vunpack.c.0.s8 %v1428
        %v1430 = vlaneseq
        %v1431 = vshrl.u32 %v1430, 7
        %v1432 = vsub.s32 %v1429, %v1431
        %v1433 = vrot.slane %v1425, %v1432
        %v1435 = vunpack.c.l.s4 1966171168
        %v1436 = vunpack.c.0.s8 %v1435
        %v1437 = vlaneseq
        %v1438 = vshrl.u32 %v1437, 7
        %v1439 = vsub.s32 %v1436, %v1438
        %v1440 = vrot.slane %v1426, %v1439
        %v1441 = vcombine.low %v1433, %v1440
        %v1443 = vunpack.c.l.s4 1966171168
        %v1444 = vunpack.c.0.s8 %v1443
        %v1445 = vlaneseq
        %v1446 = vshrl.u32 %v1445, 7
        %v1447 = vsub.s32 %v1444, %v1446
        %v1448 = vrot.slane %v1441, %v1447
        %v1450 = vadd.f32 %v1336, %v1448
        %1451 = vst.msk [vmem:[%s287] sm:$0xf] %vm1334, %v1450
        %s1452 = sand.u32 %s147, 1
        %s1453 = scalar_lea.sflag [#allocation3], %s1452
        %s1454 = sand.u32 %s147, 1
        %s1455 = smul.addr %s1454, 4
        %s1456 = scalar_lea.vmem [#allocation2], %s1455
        %s1457 = sand.u32 %s173, 1
        %s1458 = scalar_lea.sflag [#allocation5], %s1457
        %s1459 = sand.u32 %s173, 1
        %s1460 = smul.addr %s1459, 4
        %s1461 = scalar_lea.vmem [#allocation4], %s1460
        // Predicated region
        $region41: #{tpu_custom_call.1} parent=35 // pred_check
          %p1462 = pneg %p157
        $region42: #{tpu_custom_call.1} parent=35 // pred_check_branch
          %1464 = sbr.rel (%p1462) target = $region44
        $region43: #{tpu_custom_call.1} parent=35 // pred_region
          %s1465 = smul.u32 4, %s27
          %s1467 = ssub.s32 64, 64
          %1468 = vsyncadd %s1453, %s1467
          %s1469 = smul.addr %s1465, 16
          %s1470 = scalar_lea.hbm %s4, %s1469
          %s1472 = sshll.u32 %s1456, 4
          %s1473 = int_to_ptr.vmem [resolvable:$true] %s1472
          %1475 = dma.vmem_to_hbm [thread:$0]  %s1473, 64, %s1470, %s1453
        $region44: #{tpu_custom_call.1} parent=35 // pred_fallthru
          _
        // Predicated region
        $region45: #{tpu_custom_call.1} parent=35 // pred_check
          %p1476 = pneg %p183
        $region46: #{tpu_custom_call.1} parent=35 // pred_check_branch
          %1478 = sbr.rel (%p1476) target = $region48
        $region47: #{tpu_custom_call.1} parent=35 // pred_region
          %s1479 = smul.u32 4, %s27
          %s1481 = ssub.s32 64, 64
          %1482 = vsyncadd %s1458, %s1481
          %s1483 = smul.addr %s1479, 16
          %s1484 = scalar_lea.hbm %s5, %s1483
          %s1486 = sshll.u32 %s1461, 4
          %s1487 = int_to_ptr.vmem [resolvable:$true] %s1486
          %1489 = dma.vmem_to_hbm [thread:$0]  %s1487, 64, %s1484, %s1458
        $region48: #{tpu_custom_call.1} parent=35 // pred_fallthru
          _
      $region36: #{tpu_custom_call.1} parent=5 // pred_fallthru
        _
      %p1490 = scmp.le.s32.totalorder 2, %s18
      // Predicated region
      $region49: #{tpu_custom_call.1} parent=5 // pred_check
        %p1491 = pneg %p1490
      $region50: #{tpu_custom_call.1} parent=5 // pred_check_branch
        %1493 = sbr.rel (%p1491) target = $region52
      $region51: #{tpu_custom_call.1} parent=5 // pred_region
        %s1494 = ssub.s32 %s18, 2
        // Predicated region
        $region53: #{tpu_custom_call.1} parent=51 // pred_check
          %p1495 = pneg %p163
        $region54: #{tpu_custom_call.1} parent=51 // pred_check_branch
          %1497 = sbr.rel (%p1495) target = $region56
        $region55: #{tpu_custom_call.1} parent=51 // pred_region
          %s1498 = sand.u32 %s148, 1
          %s1499 = scalar_lea.sflag [#allocation3], %s1498
          %s1500 = sand.u32 %s148, 1
          %s1501 = smul.addr %s1500, 4
          %s1502 = scalar_lea.vmem [#allocation2], %s1501
          %1503 = dma.done %s1499, 64
        $region56: #{tpu_custom_call.1} parent=51 // pred_fallthru
          _
        // Predicated region
        $region57: #{tpu_custom_call.1} parent=51 // pred_check
          %p1504 = pneg %p189
        $region58: #{tpu_custom_call.1} parent=51 // pred_check_branch
          %1506 = sbr.rel (%p1504) target = $region60
        $region59: #{tpu_custom_call.1} parent=51 // pred_region
          %s1507 = sand.u32 %s174, 1
          %s1508 = scalar_lea.sflag [#allocation5], %s1507
          %s1509 = sand.u32 %s174, 1
          %s1510 = smul.addr %s1509, 4
          %s1511 = scalar_lea.vmem [#allocation4], %s1510
          %1512 = dma.done %s1508, 64
        $region60: #{tpu_custom_call.1} parent=51 // pred_fallthru
          _
      $region52: #{tpu_custom_call.1} parent=5 // pred_fallthru
        _
    $region6: #{tpu_custom_call.1} parent=1 // loop_footer
      %s22 = sadd.s32 1, %s18
    $region7: #{tpu_custom_call.1} parent=1 // loop_footer_branch
      %17 = sbr.rel target = $region3
    $region8: #{tpu_custom_call.1} parent=1 // loop_exit
      _
    %1513 = vsyncpa [#allocation3], 1
    %s1514 = scalar_lea.sflag [#allocation3], 1
    %1515 = vsyncpa %s1514, 1
    %1516 = vsyncpa [#allocation5], 1
    %s1517 = scalar_lea.sflag [#allocation5], 1
    %1518 = vsyncpa %s1517, 1

</llo_original>
